<compile_context>
chip_gen: v7x
topology: tpu7x:2x2x1
jax: 0.10.0
libtpu: 0.0.40
codegen_flags: <defaults>
</compile_context>

<pallas_src>
import jax
import jax.numpy as jnp
from jax import lax
from jax.experimental import pallas as pl
from jax.experimental.pallas import tpu as pltpu


def _round_up(n, m):
    return (n + m - 1) // m * m


def _softplus(x):
    # Numerically-stable softplus.  For f32 and x > 20 this is exactly x,
    # so it matches torch.nn.Softplus(beta=1, threshold=20) without the
    # extra compare+select per element.
    return jnp.maximum(x, 0.0) + jnp.log1p(jnp.exp(-jnp.abs(x)))


def agent_mlp_kernel(x_ref, w1t_ref, b1_ref, w2t_ref, b2_ref, o_ref):
    x = x_ref[...]        # (4, TB)    batch on lanes
    w1t = w1t_ref[...]    # (128, 4)
    w2t = w2t_ref[...]    # (4, 128)

    # ---- Layer 1 on the MXU (MXU is idle slack here; K=4 padding is free) --
    # h[j, b] = b1[j] + sum_k w1t[j, k] * x[k, b]          -> (128, TB)
    h = jnp.dot(
        w1t, x,
        preferred_element_type=jnp.float32,
        precision=lax.Precision.HIGHEST,
    )
    h = h + b1_ref[...]                                    # (128, 1) bcast

    h = _softplus(h)

    # ---- Layer 2 on the MXU: full K=128 contraction ------------------------
    y = jnp.dot(
        w2t, h,
        preferred_element_type=jnp.float32,
        precision=lax.Precision.HIGHEST,
    )                                                      # (4, TB)
    y = y + b2_ref[...]                                    # (4, 1) bcast
    o_ref[...] = y.astype(o_ref.dtype)


def agent_forward(x, w1, b1, w2, b2, *, block_b=8192):
    """x: (B, 4); w1: (4, 128); b1: (128,); w2: (128, 4); b2: (4,) -> (B, 4)."""
    B = x.shape[0]

    # Batch tile on the lane axis: multiple of 128, capped at block_b.  When
    # the batch spans >= 2 tiles' worth of lanes, split it into >= 2 grid
    # steps so v7x's two TensorCores both get work along the "parallel" axis.
    B_pad_min = _round_up(max(B, 1), 128)
    if B_pad_min >= 256:
        TB = min(block_b, _round_up(pl.cdiv(B_pad_min, 2), 128))
    else:
        TB = B_pad_min
    TB = max(TB, 128)
    B_pad = _round_up(B, TB)

    # Transposed / padded layouts (feature-major, batch on lanes).
    xt = jnp.pad(x.T, ((0, 0), (0, B_pad - B)))              # (4, B_pad)
    w1t = w1.T                                               # (128, 4)
    b1c = b1.reshape(128, 1)                                 # (128, 1)
    w2t = w2.T                                               # (4, 128)
    b2c = b2.reshape(4, 1)                                   # (4, 1)

    grid = (B_pad // TB,)
    const = lambda shape: pl.BlockSpec(shape, lambda i: (0, 0))

    # Rough scoped-VMEM need: double-buffered (4,TB) I/O tiles, the (128,TB)
    # hidden intermediate plus temporaries, and the tiny resident params.
    vmem_bytes = (
        2 * 2 * 4 * TB * 4          # in/out tiles, double-buffered
        + 3 * 128 * TB * 4          # hidden activation + softplus temps
        + (128 * 4 + 128 + 4 * 128 + 4) * 4
    )
    vmem_limit = int(min(max(vmem_bytes, 16 << 20), 32 << 20))

    yt = pl.pallas_call(
        agent_mlp_kernel,
        out_shape=jax.ShapeDtypeStruct((4, B_pad), x.dtype),
        grid=grid,
        in_specs=[
            pl.BlockSpec((4, TB), lambda i: (0, i)),  # activations: batch-tiled
            const(w1t.shape),                         # params: resident in VMEM
            const(b1c.shape),
            const(w2t.shape),
            const(b2c.shape),
        ],
        out_specs=pl.BlockSpec((4, TB), lambda i: (0, i)),
        compiler_params=pltpu.CompilerParams(
            dimension_semantics=("parallel",),        # megacore split on v7x
            vmem_limit_bytes=vmem_limit,              # headroom on v5e defaults
        ),
        cost_estimate=pl.CostEstimate(
            flops=2 * B_pad * (4 * 128 + 128 * 4),
            transcendentals=2 * B_pad * 128,          # exp + log1p per hidden elem
            bytes_accessed=4 * (2 * B_pad * 4 + 2 * 4 * 128 + 128 + 4),
        ),
    )(xt, w1t, b1c, w2t, b2c)

    # Return batch-major (B, 4) to match the PyTorch module's output layout.
    return yt[:, :B].T


def init_params(key):
    # Deterministic init mimicking nn.Linear's uniform(-1/sqrt(fan_in), +).
    k1, k2, k3, k4 = jax.random.split(key, 4)
    lim1 = 1.0 / jnp.sqrt(4.0)
    lim2 = 1.0 / jnp.sqrt(128.0)
    w1 = jax.random.uniform(k1, (4, 128), jnp.float32, -lim1, lim1)
    b1 = jax.random.uniform(k2, (128,), jnp.float32, -lim1, lim1)
    w2 = jax.random.uniform(k3, (128, 4), jnp.float32, -lim2, lim2)
    b2 = jax.random.uniform(k4, (4,), jnp.float32, -lim2, lim2)
    return w1, b1, w2, b2


def _ref_forward(x, w1, b1, w2, b2):
    # Plain-JAX reference mirroring torch exactly (Softplus threshold=20).
    h = jnp.dot(x, w1, precision=lax.Precision.HIGHEST) + b1
    h = jnp.where(h > 20.0, h, jnp.maximum(h, 0.0) + jnp.log1p(jnp.exp(-jnp.abs(h))))
    return jnp.dot(h, w2, precision=lax.Precision.HIGHEST) + b2


if __name__ == "__main__":
    key = jax.random.PRNGKey(0)
    pkey, xkey = jax.random.split(key)
    w1, b1, w2, b2 = init_params(pkey)

    B = 8  # small batch of 4-dim states
    x = jax.random.normal(xkey, (B, 4), jnp.float32)

    out = jax.block_until_ready(agent_forward(x, w1, b1, w2, b2))

    ref = _ref_forward(x, w1, b1, w2, b2)
    assert out.shape == (B, 4)
    assert jnp.allclose(out, ref, atol=1e-5, rtol=1e-5)

    print("KERNEL_OK")
</pallas_src>

<mosaic_0001>
module attributes {stable_mosaic.version = 11 : i64} {
  func.func @agent_mlp_kernel(%arg0: i32, %arg1: memref<4x128xf32, #tpu.memory_space<vmem>>, %arg2: memref<128x4xf32, #tpu.memory_space<vmem>>, %arg3: memref<128x1xf32, #tpu.memory_space<vmem>>, %arg4: memref<4x128xf32, #tpu.memory_space<vmem>>, %arg5: memref<4x1xf32, #tpu.memory_space<vmem>>, %arg6: memref<4x128xf32, #tpu.memory_space<vmem>>) attributes {dimension_semantics = [#tpu.dimension_semantics<parallel>], iteration_bounds = array<i64: 1>, scalar_prefetch = 0 : i64, scratch_operands = 0 : i64, tpu.core_type = #tpu.core_type<tc>, window_params = [{transform_indices = @transform_0, window_bounds = array<i64: 4, 128>}, {pipeline_mode = #tpu.pipeline_mode<synchronous>, transform_indices = @transform_1, window_bounds = array<i64: 128, 4>}, {pipeline_mode = #tpu.pipeline_mode<synchronous>, transform_indices = @transform_2, window_bounds = array<i64: 128, 1>}, {pipeline_mode = #tpu.pipeline_mode<synchronous>, transform_indices = @transform_3, window_bounds = array<i64: 4, 128>}, {pipeline_mode = #tpu.pipeline_mode<synchronous>, transform_indices = @transform_4, window_bounds = array<i64: 4, 1>}, {transform_indices = @transform_5, window_bounds = array<i64: 4, 128>}]} {
    %c0 = arith.constant 0 : index
    %c0_0 = arith.constant 0 : index
    %0 = vector.load %arg1[%c0, %c0_0] : memref<4x128xf32, #tpu.memory_space<vmem>>, vector<4x128xf32>
    %c0_1 = arith.constant 0 : index
    %c0_2 = arith.constant 0 : index
    %1 = vector.load %arg2[%c0_1, %c0_2] : memref<128x4xf32, #tpu.memory_space<vmem>>, vector<128x4xf32>
    %c0_3 = arith.constant 0 : index
    %c0_4 = arith.constant 0 : index
    %2 = vector.load %arg4[%c0_3, %c0_4] : memref<4x128xf32, #tpu.memory_space<vmem>>, vector<4x128xf32>
    %cst = arith.constant dense<0.000000e+00> : vector<128x128xf32>
    %3 = tpu.matmul %1, %0, %cst {dimension_numbers = #tpu.dot_dimension_numbers<[1], [0], [0], [1], [0, 0, 1, 1], [], []>, precision = #tpu.contract_precision<fp32>} : vector<128x4xf32>, vector<4x128xf32>, vector<128x128xf32> -> vector<128x128xf32>
    %c0_5 = arith.constant 0 : index
    %c0_6 = arith.constant 0 : index
    %4 = vector.load %arg3[%c0_5, %c0_6] : memref<128x1xf32, #tpu.memory_space<vmem>>, vector<128x1xf32>
    %5 = vector.broadcast %4 : vector<128x1xf32> to vector<128x128xf32>
    %6 = arith.addf %3, %5 : vector<128x128xf32>
    %cst_7 = arith.constant 0.000000e+00 : f32
    %7 = vector.broadcast %cst_7 : f32 to vector<128x128xf32>
    %8 = arith.maximumf %6, %7 : vector<128x128xf32>
    %9 = math.absf %6 : vector<128x128xf32>
    %cst_8 = arith.constant 0.000000e+00 : f32
    %10 = vector.broadcast %cst_8 : f32 to vector<128x128xf32>
    %11 = arith.subf %10, %9 : vector<128x128xf32>
    %12 = math.exp %11 : vector<128x128xf32>
    %13 = math.log1p %12 : vector<128x128xf32>
    %14 = arith.addf %8, %13 : vector<128x128xf32>
    %cst_9 = arith.constant dense<0.000000e+00> : vector<4x128xf32>
    %15 = tpu.matmul %2, %14, %cst_9 {dimension_numbers = #tpu.dot_dimension_numbers<[1], [0], [0], [1], [0, 0, 1, 1], [], []>, precision = #tpu.contract_precision<fp32>} : vector<4x128xf32>, vector<128x128xf32>, vector<4x128xf32> -> vector<4x128xf32>
    %c0_10 = arith.constant 0 : index
    %c0_11 = arith.constant 0 : index
    %16 = vector.load %arg5[%c0_10, %c0_11] : memref<4x1xf32, #tpu.memory_space<vmem>>, vector<4x1xf32>
    %17 = vector.broadcast %16 : vector<4x1xf32> to vector<4x128xf32>
    %18 = arith.addf %15, %17 : vector<4x128xf32>
    %c0_12 = arith.constant 0 : index
    %c0_13 = arith.constant 0 : index
    %19 = vector.load %arg6[%c0_12, %c0_13] : memref<4x128xf32, #tpu.memory_space<vmem>>, vector<4x128xf32>
    tpu.vector_store %arg6[%c0_12, %c0_13], %18 {strides = array<i32>} : memref<4x128xf32, #tpu.memory_space<vmem>>, vector<4x128xf32>,
    return
  }
  func.func @transform_0(%arg0: i32) -> (i32, i32) {
    %c0_i32 = arith.constant 0 : i32
    %c0_i32_0 = arith.constant 0 : i32
    return %c0_i32, %arg0 : i32, i32
  }
  func.func @transform_1(%arg0: i32) -> (i32, i32) {
    %c0_i32 = arith.constant 0 : i32
    %c0_i32_0 = arith.constant 0 : i32
    %c0_i32_1 = arith.constant 0 : i32
    return %c0_i32, %c0_i32_0 : i32, i32
  }
  func.func @transform_2(%arg0: i32) -> (i32, i32) {
    %c0_i32 = arith.constant 0 : i32
    %c0_i32_0 = arith.constant 0 : i32
    %c0_i32_1 = arith.constant 0 : i32
    return %c0_i32, %c0_i32_0 : i32, i32
  }
  func.func @transform_3(%arg0: i32) -> (i32, i32) {
    %c0_i32 = arith.constant 0 : i32
    %c0_i32_0 = arith.constant 0 : i32
    %c0_i32_1 = arith.constant 0 : i32
    return %c0_i32, %c0_i32_0 : i32, i32
  }
  func.func @transform_4(%arg0: i32) -> (i32, i32) {
    %c0_i32 = arith.constant 0 : i32
    %c0_i32_0 = arith.constant 0 : i32
    %c0_i32_1 = arith.constant 0 : i32
    return %c0_i32, %c0_i32_0 : i32, i32
  }
  func.func @transform_5(%arg0: i32) -> (i32, i32) {
    %c0_i32 = arith.constant 0 : i32
    %c0_i32_0 = arith.constant 0 : i32
    return %c0_i32, %arg0 : i32, i32
  }
}

</mosaic_0001>

<llo_original>
// kernel: tpu_custom_call.1
$region0: #{tpu_custom_call.1}
  #allocation0 [shape = 'u32[]', space=smem, size = 0x4, offset = 0x4, fixed_abs, tag = 'smem constant byte address 0x4 - core index']
  #allocation1 [shape = 'u32[144,128]{1,0:T(1,128)}', space=vmem, size = 0x12000, scoped, tag = 'internal scratch']
  %s0 = inlined_call_operand.vmem [shape: f32[4,128], index: 0, kind: input, shape index: {}]
  %s1 = inlined_call_operand.vmem [shape: f32[128,4], index: 1, kind: input, shape index: {}]
  %s2 = inlined_call_operand.vmem [shape: f32[128,1], index: 2, kind: input, shape index: {}]
  %s3 = inlined_call_operand.vmem [shape: f32[4,128], index: 3, kind: input, shape index: {}]
  %s4 = inlined_call_operand.vmem [shape: f32[4,1], index: 4, kind: input, shape index: {}]
  %s5 = inlined_call_operand.hbm [shape: f32[4,128], index: 5, kind: output, shape index: {}]
  %s6 = sld [smem:[#allocation0]]
  $region30: #{tpu_custom_call.1} parent=0
    _
  %s8 = ssub.s32 1, %s6
  %s9 = scalar_select 0, %s8, %s6
  $region1: #{tpu_custom_call.1} parent=0
    #allocation2 [shape = 'u8[2048]{0}', space=vmem, size = 0x800, scoped, tag = 'output window, operand 0, single buffered']
    #allocation3 [shape = 's32[1]{0}', space=sflag, size = 0x4, scoped, tag = 'scoped memory for tpu_custom_call.1']
    %10 = vsyncpa [#allocation3], 0
    // Predicated region
    $region2: #{tpu_custom_call.1} parent=1 // pred_check
      _
    $region3: #{tpu_custom_call.1} parent=1 // pred_check_branch
      %12 = sbr.rel (0) target = $region5
    $region4: #{tpu_custom_call.1} parent=1 // pred_region
      _
    $region5: #{tpu_custom_call.1} parent=1 // pred_fallthru
      _
    // Predicated region
    $region6: #{tpu_custom_call.1} parent=1 // pred_check
      _
    $region7: #{tpu_custom_call.1} parent=1 // pred_check_branch
      %14 = sbr.rel (0) target = $region9
    $region8: #{tpu_custom_call.1} parent=1 // pred_region
      _
    $region9: #{tpu_custom_call.1} parent=1 // pred_fallthru
      _
    // Predicated region
    $region10: #{tpu_custom_call.1} parent=1 // pred_check
      _
    $region11: #{tpu_custom_call.1} parent=1 // pred_check_branch
      %16 = sbr.rel (0) target = $region13
    $region12: #{tpu_custom_call.1} parent=1 // pred_region
      _
    $region13: #{tpu_custom_call.1} parent=1 // pred_fallthru
      _
    // Predicated region
    $region14: #{tpu_custom_call.1} parent=1 // pred_check
      _
    $region15: #{tpu_custom_call.1} parent=1 // pred_check_branch
      %18 = sbr.rel (0) target = $region17
    $region16: #{tpu_custom_call.1} parent=1 // pred_region
      _
    $region17: #{tpu_custom_call.1} parent=1 // pred_fallthru
      _
    // Predicated region
    $region18: #{tpu_custom_call.1} parent=1 // pred_check
      _
    $region19: #{tpu_custom_call.1} parent=1 // pred_check_branch
      %20 = sbr.rel (0) target = $region21
    $region20: #{tpu_custom_call.1} parent=1 // pred_region
      _
    $region21: #{tpu_custom_call.1} parent=1 // pred_fallthru
      _
    %v21 = vld [vmem:[%s0] sm:$0xf]
    %v22 = vld [vmem:[%s1] sm:$0xff]
    %v23 = vld [vmem:[%s1 + $0x8] sm:$0xff]
    %v24 = vld [vmem:[%s1 + $0x10] sm:$0xff]
    %v25 = vld [vmem:[%s1 + $0x18] sm:$0xff]
    %v26 = vld [vmem:[%s1 + $0x20] sm:$0xff]
    %v27 = vld [vmem:[%s1 + $0x28] sm:$0xff]
    %v28 = vld [vmem:[%s1 + $0x30] sm:$0xff]
    %v29 = vld [vmem:[%s1 + $0x38] sm:$0xff]
    %v30 = vld [vmem:[%s1 + $0x40] sm:$0xff]
    %v31 = vld [vmem:[%s1 + $0x48] sm:$0xff]
    %v32 = vld [vmem:[%s1 + $0x50] sm:$0xff]
    %v33 = vld [vmem:[%s1 + $0x58] sm:$0xff]
    %v34 = vld [vmem:[%s1 + $0x60] sm:$0xff]
    %v35 = vld [vmem:[%s1 + $0x68] sm:$0xff]
    %v36 = vld [vmem:[%s1 + $0x70] sm:$0xff]
    %v37 = vld [vmem:[%s1 + $0x78] sm:$0xff]
    %v38 = vld [vmem:[%s3] sm:$0xf]
    %v39 = vld [vmem:[%s2] sm:$0xff]
    %v40 = vld [vmem:[%s2 + $0x8] sm:$0xff]
    %v41 = vld [vmem:[%s2 + $0x10] sm:$0xff]
    %v42 = vld [vmem:[%s2 + $0x18] sm:$0xff]
    %v43 = vld [vmem:[%s2 + $0x20] sm:$0xff]
    %v44 = vld [vmem:[%s2 + $0x28] sm:$0xff]
    %v45 = vld [vmem:[%s2 + $0x30] sm:$0xff]
    %v46 = vld [vmem:[%s2 + $0x38] sm:$0xff]
    %v47 = vld [vmem:[%s2 + $0x40] sm:$0xff]
    %v48 = vld [vmem:[%s2 + $0x48] sm:$0xff]
    %v49 = vld [vmem:[%s2 + $0x50] sm:$0xff]
    %v50 = vld [vmem:[%s2 + $0x58] sm:$0xff]
    %v51 = vld [vmem:[%s2 + $0x60] sm:$0xff]
    %v52 = vld [vmem:[%s2 + $0x68] sm:$0xff]
    %v53 = vld [vmem:[%s2 + $0x70] sm:$0xff]
    %v54 = vld [vmem:[%s2 + $0x78] sm:$0xff]
    %56 = vset.pattern.permute.xlu0 0
    %57 = vperm.xlu0 %56, %v39
    %v58 = vpop.permute.xlu0 %57
    %61 = vset.pattern.permute.xlu0 0
    %62 = vperm.xlu0 %61, %v40
    %v63 = vpop.permute.xlu0 %62
    %66 = vset.pattern.permute.xlu0 0
    %67 = vperm.xlu0 %66, %v41
    %v68 = vpop.permute.xlu0 %67
    %71 = vset.pattern.permute.xlu0 0
    %72 = vperm.xlu0 %71, %v42
    %v73 = vpop.permute.xlu0 %72
    %76 = vset.pattern.permute.xlu0 0
    %77 = vperm.xlu0 %76, %v43
    %v78 = vpop.permute.xlu0 %77
    %81 = vset.pattern.permute.xlu0 0
    %82 = vperm.xlu0 %81, %v44
    %v83 = vpop.permute.xlu0 %82
    %86 = vset.pattern.permute.xlu0 0
    %87 = vperm.xlu0 %86, %v45
    %v88 = vpop.permute.xlu0 %87
    %91 = vset.pattern.permute.xlu0 0
    %92 = vperm.xlu0 %91, %v46
    %v93 = vpop.permute.xlu0 %92
    %96 = vset.pattern.permute.xlu0 0
    %97 = vperm.xlu0 %96, %v47
    %v98 = vpop.permute.xlu0 %97
    %101 = vset.pattern.permute.xlu0 0
    %102 = vperm.xlu0 %101, %v48
    %v103 = vpop.permute.xlu0 %102
    %106 = vset.pattern.permute.xlu0 0
    %107 = vperm.xlu0 %106, %v49
    %v108 = vpop.permute.xlu0 %107
    %111 = vset.pattern.permute.xlu0 0
    %112 = vperm.xlu0 %111, %v50
    %v113 = vpop.permute.xlu0 %112
    %116 = vset.pattern.permute.xlu0 0
    %117 = vperm.xlu0 %116, %v51
    %v118 = vpop.permute.xlu0 %117
    %121 = vset.pattern.permute.xlu0 0
    %122 = vperm.xlu0 %121, %v52
    %v123 = vpop.permute.xlu0 %122
    %126 = vset.pattern.permute.xlu0 0
    %127 = vperm.xlu0 %126, %v53
    %v128 = vpop.permute.xlu0 %127
    %131 = vset.pattern.permute.xlu0 0
    %132 = vperm.xlu0 %131, %v54
    %v133 = vpop.permute.xlu0 %132
    %vm135 = vcmask 31744
    %v137 = vsel %vm135, %v22, 0
    %v140 = vsel %vm135, %v23, 0
    %v143 = vsel %vm135, %v24, 0
    %v146 = vsel %vm135, %v25, 0
    %v149 = vsel %vm135, %v26, 0
    %v152 = vsel %vm135, %v27, 0
    %v155 = vsel %vm135, %v28, 0
    %v158 = vsel %vm135, %v29, 0
    %v161 = vsel %vm135, %v30, 0
    %v164 = vsel %vm135, %v31, 0
    %v167 = vsel %vm135, %v32, 0
    %v170 = vsel %vm135, %v33, 0
    %v173 = vsel %vm135, %v34, 0
    %v176 = vsel %vm135, %v35, 0
    %v179 = vsel %vm135, %v36, 0
    %v182 = vsel %vm135, %v37, 0
    %vm184 = vcmask 1043456
    %v186 = vsel %vm184, %v21, 0
    %188 = vmatprep.subr.mxu0 0.0
    %v189 = vand.u32 %v186, 4294901760
    %190 = vmatpush1.msra.mxu0 %v189
    %191 = vmatprep.subr.mxu0 0.0
    %192 = vmatpush1.msra.mxu0 0.0
    %193 = vmatprep.subr.mxu0 0.0
    %194 = vmatpush1.msra.mxu0 0.0
    %195 = vmatprep.subr.mxu0 0.0
    %196 = vmatpush1.msra.mxu0 0.0
    %197 = vmatprep.subr.mxu0 0.0
    %198 = vmatpush1.msra.mxu0 0.0
    %199 = vmatprep.subr.mxu0 0.0
    %200 = vmatpush1.msra.mxu0 0.0
    %201 = vmatprep.subr.mxu0 0.0
    %202 = vmatpush1.msra.mxu0 0.0
    %203 = vmatprep.subr.mxu0 0.0
    %204 = vmatpush1.msra.mxu0 0.0
    %205 = vmatprep.subr.mxu0 0.0
    %206 = vmatpush1.msra.mxu0 0.0
    %207 = vmatprep.subr.mxu0 0.0
    %208 = vmatpush1.msra.mxu0 0.0
    %209 = vmatprep.subr.mxu0 0.0
    %210 = vmatpush1.msra.mxu0 0.0
    %211 = vmatprep.subr.mxu0 0.0
    %212 = vmatpush1.msra.mxu0 0.0
    %213 = vmatprep.subr.mxu0 0.0
    %214 = vmatpush1.msra.mxu0 0.0
    %215 = vmatprep.subr.mxu0 0.0
    %216 = vmatpush1.msra.mxu0 0.0
    %217 = vmatprep.subr.mxu0 0.0
    %218 = vmatpush1.msra.mxu0 0.0
    %219 = vmatprep.subr.mxu0 0.0
    %220 = vmatpush1.msra.mxu0 0.0
    %221 = vmatprep.subr.mxu0 0.0
    %222 = vmatpush1.msra.mxu0 0.0
    %223 = vmatprep.subr.mxu0 0.0
    %224 = vmatpush1.msra.mxu0 0.0
    %225 = vmatprep.subr.mxu0 0.0
    %226 = vmatpush1.msra.mxu0 0.0
    %227 = vmatprep.subr.mxu0 0.0
    %228 = vmatpush1.msra.mxu0 0.0
    %229 = vmatprep.subr.mxu0 0.0
    %230 = vmatpush1.msra.mxu0 0.0
    %231 = vmatprep.subr.mxu0 0.0
    %232 = vmatpush1.msra.mxu0 0.0
    %233 = vmatprep.subr.mxu0 0.0
    %234 = vmatpush1.msra.mxu0 0.0
    %235 = vmatprep.subr.mxu0 0.0
    %236 = vmatpush1.msra.mxu0 0.0
    %237 = vmatprep.subr.mxu0 0.0
    %238 = vmatpush1.msra.mxu0 0.0
    %239 = vmatprep.subr.mxu0 0.0
    %240 = vmatpush1.msra.mxu0 0.0
    %241 = vmatprep.subr.mxu0 0.0
    %242 = vmatpush1.msra.mxu0 0.0
    %243 = vmatprep.subr.mxu0 0.0
    %244 = vmatpush1.msra.mxu0 0.0
    %245 = vmatprep.subr.mxu0 0.0
    %246 = vmatpush1.msra.mxu0 0.0
    %247 = vmatprep.subr.mxu0 0.0
    %248 = vmatpush1.msra.mxu0 0.0
    %249 = vmatprep.subr.mxu0 0.0
    %250 = vmatpush1.msra.mxu0 0.0
    %251 = vmatprep.subr.mxu0 0.0
    %252 = vmatpush1.msra.mxu0 0.0
    %253 = vmatprep.mubr.f32.mxu0 0.0
    %v254 = vand.u32 %v137, 4294901760
    %v255 = vsub.f32 %v137, %v254
    %v256 = vand.u32 %v255, 4294901760
    %v257 = vsub.f32 %v255, %v256
    %v258 = vand.u32 %v257, 4294901760
    %259 = vmatmul.mubr.f32.gmra.mrb[0].mxu0 %v258
    %v260 = vpop.f32.mrb[0].mxu0
    %v261 = vadd.f32 %v58, %v260
    %v262 = vpop.f32.mrb[0].mxu0
    %263 = vmatprep.mubr.f32.mxu0 0.0
    %v264 = vand.u32 %v140, 4294901760
    %v265 = vsub.f32 %v140, %v264
    %v266 = vand.u32 %v265, 4294901760
    %v267 = vsub.f32 %v265, %v266
    %v268 = vand.u32 %v267, 4294901760
    %269 = vmatmul.mubr.f32.gmra.mrb[0].mxu0 %v268
    %v270 = vpop.f32.mrb[0].mxu0
    %v271 = vadd.f32 %v63, %v270
    %v272 = vpop.f32.mrb[0].mxu0
    %273 = vmatprep.mubr.f32.mxu0 0.0
    %v274 = vand.u32 %v143, 4294901760
    %v275 = vsub.f32 %v143, %v274
    %v276 = vand.u32 %v275, 4294901760
    %v277 = vsub.f32 %v275, %v276
    %v278 = vand.u32 %v277, 4294901760
    %279 = vmatmul.mubr.f32.gmra.mrb[0].mxu0 %v278
    %v280 = vpop.f32.mrb[0].mxu0
    %v281 = vadd.f32 %v68, %v280
    %v282 = vpop.f32.mrb[0].mxu0
    %283 = vmatprep.mubr.f32.mxu0 0.0
    %v284 = vand.u32 %v146, 4294901760
    %v285 = vsub.f32 %v146, %v284
    %v286 = vand.u32 %v285, 4294901760
    %v287 = vsub.f32 %v285, %v286
    %v288 = vand.u32 %v287, 4294901760
    %289 = vmatmul.mubr.f32.gmra.mrb[0].mxu0 %v288
    %v290 = vpop.f32.mrb[0].mxu0
    %v291 = vadd.f32 %v73, %v290
    %v292 = vpop.f32.mrb[0].mxu0
    %293 = vmatprep.mubr.f32.mxu0 0.0
    %v294 = vand.u32 %v149, 4294901760
    %v295 = vsub.f32 %v149, %v294
    %v296 = vand.u32 %v295, 4294901760
    %v297 = vsub.f32 %v295, %v296
    %v298 = vand.u32 %v297, 4294901760
    %299 = vmatmul.mubr.f32.gmra.mrb[0].mxu0 %v298
    %v300 = vpop.f32.mrb[0].mxu0
    %v301 = vadd.f32 %v78, %v300
    %v302 = vpop.f32.mrb[0].mxu0
    %303 = vmatprep.mubr.f32.mxu0 0.0
    %v304 = vand.u32 %v152, 4294901760
    %v305 = vsub.f32 %v152, %v304
    %v306 = vand.u32 %v305, 4294901760
    %v307 = vsub.f32 %v305, %v306
    %v308 = vand.u32 %v307, 4294901760
    %309 = vmatmul.mubr.f32.gmra.mrb[0].mxu0 %v308
    %v310 = vpop.f32.mrb[0].mxu0
    %v311 = vadd.f32 %v83, %v310
    %v312 = vpop.f32.mrb[0].mxu0
    %313 = vmatprep.mubr.f32.mxu0 0.0
    %v314 = vand.u32 %v155, 4294901760
    %v315 = vsub.f32 %v155, %v314
    %v316 = vand.u32 %v315, 4294901760
    %v317 = vsub.f32 %v315, %v316
    %v318 = vand.u32 %v317, 4294901760
    %319 = vmatmul.mubr.f32.gmra.mrb[0].mxu0 %v318
    %v320 = vpop.f32.mrb[0].mxu0
    %v321 = vadd.f32 %v88, %v320
    %v322 = vpop.f32.mrb[0].mxu0
    %323 = vmatprep.mubr.f32.mxu0 0.0
    %v324 = vand.u32 %v158, 4294901760
    %v325 = vsub.f32 %v158, %v324
    %v326 = vand.u32 %v325, 4294901760
    %v327 = vsub.f32 %v325, %v326
    %v328 = vand.u32 %v327, 4294901760
    %329 = vmatmul.mubr.f32.gmra.mrb[0].mxu0 %v328
    %v330 = vpop.f32.mrb[0].mxu0
    %v331 = vadd.f32 %v93, %v330
    %v332 = vpop.f32.mrb[0].mxu0
    %333 = vmatprep.mubr.f32.mxu0 0.0
    %v334 = vand.u32 %v161, 4294901760
    %v335 = vsub.f32 %v161, %v334
    %v336 = vand.u32 %v335, 4294901760
    %v337 = vsub.f32 %v335, %v336
    %v338 = vand.u32 %v337, 4294901760
    %339 = vmatmul.mubr.f32.gmra.mrb[0].mxu0 %v338
    %v340 = vpop.f32.mrb[0].mxu0
    %v341 = vadd.f32 %v98, %v340
    %v342 = vpop.f32.mrb[0].mxu0
    %343 = vmatprep.mubr.f32.mxu0 0.0
    %v344 = vand.u32 %v164, 4294901760
    %v345 = vsub.f32 %v164, %v344
    %v346 = vand.u32 %v345, 4294901760
    %v347 = vsub.f32 %v345, %v346
    %v348 = vand.u32 %v347, 4294901760
    %349 = vmatmul.mubr.f32.gmra.mrb[0].mxu0 %v348
    %v350 = vpop.f32.mrb[0].mxu0
    %v351 = vadd.f32 %v103, %v350
    %v352 = vpop.f32.mrb[0].mxu0
    %353 = vmatprep.mubr.f32.mxu0 0.0
    %v354 = vand.u32 %v167, 4294901760
    %v355 = vsub.f32 %v167, %v354
    %v356 = vand.u32 %v355, 4294901760
    %v357 = vsub.f32 %v355, %v356
    %v358 = vand.u32 %v357, 4294901760
    %359 = vmatmul.mubr.f32.gmra.mrb[0].mxu0 %v358
    %v360 = vpop.f32.mrb[0].mxu0
    %v361 = vadd.f32 %v108, %v360
    %v362 = vpop.f32.mrb[0].mxu0
    %363 = vmatprep.mubr.f32.mxu0 0.0
    %v364 = vand.u32 %v170, 4294901760
    %v365 = vsub.f32 %v170, %v364
    %v366 = vand.u32 %v365, 4294901760
    %v367 = vsub.f32 %v365, %v366
    %v368 = vand.u32 %v367, 4294901760
    %369 = vmatmul.mubr.f32.gmra.mrb[0].mxu0 %v368
    %v370 = vpop.f32.mrb[0].mxu0
    %v371 = vadd.f32 %v113, %v370
    %v372 = vpop.f32.mrb[0].mxu0
    %373 = vmatprep.mubr.f32.mxu0 0.0
    %v374 = vand.u32 %v173, 4294901760
    %v375 = vsub.f32 %v173, %v374
    %v376 = vand.u32 %v375, 4294901760
    %v377 = vsub.f32 %v375, %v376
    %v378 = vand.u32 %v377, 4294901760
    %379 = vmatmul.mubr.f32.gmra.mrb[0].mxu0 %v378
    %v380 = vpop.f32.mrb[0].mxu0
    %v381 = vadd.f32 %v118, %v380
    %v382 = vpop.f32.mrb[0].mxu0
    %383 = vmatprep.mubr.f32.mxu0 0.0
    %v384 = vand.u32 %v176, 4294901760
    %v385 = vsub.f32 %v176, %v384
    %v386 = vand.u32 %v385, 4294901760
    %v387 = vsub.f32 %v385, %v386
    %v388 = vand.u32 %v387, 4294901760
    %389 = vmatmul.mubr.f32.gmra.mrb[0].mxu0 %v388
    %v390 = vpop.f32.mrb[0].mxu0
    %v391 = vadd.f32 %v123, %v390
    %v392 = vpop.f32.mrb[0].mxu0
    %393 = vmatprep.mubr.f32.mxu0 0.0
    %v394 = vand.u32 %v179, 4294901760
    %v395 = vsub.f32 %v179, %v394
    %v396 = vand.u32 %v395, 4294901760
    %v397 = vsub.f32 %v395, %v396
    %v398 = vand.u32 %v397, 4294901760
    %399 = vmatmul.mubr.f32.gmra.mrb[0].mxu0 %v398
    %v400 = vpop.f32.mrb[0].mxu0
    %v401 = vadd.f32 %v128, %v400
    %v402 = vpop.f32.mrb[0].mxu0
    %403 = vmatprep.mubr.f32.mxu0 0.0
    %v404 = vand.u32 %v182, 4294901760
    %v405 = vsub.f32 %v182, %v404
    %v406 = vand.u32 %v405, 4294901760
    %v407 = vsub.f32 %v405, %v406
    %v408 = vand.u32 %v407, 4294901760
    %409 = vmatmul.mubr.f32.gmra.mrb[0].mxu0 %v408
    %v410 = vpop.f32.mrb[0].mxu0
    %v411 = vadd.f32 %v133, %v410
    %v412 = vpop.f32.mrb[0].mxu0
    %413 = vdwg.mxu0
    %414 = vmatprep.subr.mxu0 0.0
    %v415 = vand.u32 %v186, 4294901760
    %v416 = vsub.f32 %v186, %v415
    %v417 = vand.u32 %v416, 4294901760
    %v418 = vsub.f32 %v416, %v417
    %v419 = vand.u32 %v418, 4294901760
    %420 = vmatpush1.msra.mxu0 %v419
    %421 = vmatprep.subr.mxu0 0.0
    %422 = vmatpush1.msra.mxu0 0.0
    %423 = vmatprep.subr.mxu0 0.0
    %424 = vmatpush1.msra.mxu0 0.0
    %425 = vmatprep.subr.mxu0 0.0
    %426 = vmatpush1.msra.mxu0 0.0
    %427 = vmatprep.subr.mxu0 0.0
    %428 = vmatpush1.msra.mxu0 0.0
    %429 = vmatprep.subr.mxu0 0.0
    %430 = vmatpush1.msra.mxu0 0.0
    %431 = vmatprep.subr.mxu0 0.0
    %432 = vmatpush1.msra.mxu0 0.0
    %433 = vmatprep.subr.mxu0 0.0
    %434 = vmatpush1.msra.mxu0 0.0
    %435 = vmatprep.subr.mxu0 0.0
    %436 = vmatpush1.msra.mxu0 0.0
    %437 = vmatprep.subr.mxu0 0.0
    %438 = vmatpush1.msra.mxu0 0.0
    %439 = vmatprep.subr.mxu0 0.0
    %440 = vmatpush1.msra.mxu0 0.0
    %441 = vmatprep.subr.mxu0 0.0
    %442 = vmatpush1.msra.mxu0 0.0
    %443 = vmatprep.subr.mxu0 0.0
    %444 = vmatpush1.msra.mxu0 0.0
    %445 = vmatprep.subr.mxu0 0.0
    %446 = vmatpush1.msra.mxu0 0.0
    %447 = vmatprep.subr.mxu0 0.0
    %448 = vmatpush1.msra.mxu0 0.0
    %449 = vmatprep.subr.mxu0 0.0
    %450 = vmatpush1.msra.mxu0 0.0
    %451 = vmatprep.subr.mxu0 0.0
    %452 = vmatpush1.msra.mxu0 0.0
    %453 = vmatprep.subr.mxu0 0.0
    %454 = vmatpush1.msra.mxu0 0.0
    %455 = vmatprep.subr.mxu0 0.0
    %456 = vmatpush1.msra.mxu0 0.0
    %457 = vmatprep.subr.mxu0 0.0
    %458 = vmatpush1.msra.mxu0 0.0
    %459 = vmatprep.subr.mxu0 0.0
    %460 = vmatpush1.msra.mxu0 0.0
    %461 = vmatprep.subr.mxu0 0.0
    %462 = vmatpush1.msra.mxu0 0.0
    %463 = vmatprep.subr.mxu0 0.0
    %464 = vmatpush1.msra.mxu0 0.0
    %465 = vmatprep.subr.mxu0 0.0
    %466 = vmatpush1.msra.mxu0 0.0
    %467 = vmatprep.subr.mxu0 0.0
    %468 = vmatpush1.msra.mxu0 0.0
    %469 = vmatprep.subr.mxu0 0.0
    %470 = vmatpush1.msra.mxu0 0.0
    %471 = vmatprep.subr.mxu0 0.0
    %472 = vmatpush1.msra.mxu0 0.0
    %473 = vmatprep.subr.mxu0 0.0
    %474 = vmatpush1.msra.mxu0 0.0
    %475 = vmatprep.subr.mxu0 0.0
    %476 = vmatpush1.msra.mxu0 0.0
    %477 = vmatprep.subr.mxu0 0.0
    %478 = vmatpush1.msra.mxu0 0.0
    %479 = vmatprep.subr.mxu0 0.0
    %480 = vmatpush1.msra.mxu0 0.0
    %481 = vmatprep.subr.mxu0 0.0
    %482 = vmatpush1.msra.mxu0 0.0
    %483 = vmatprep.mubr.f32.mxu0 0.0
    %v484 = vand.u32 %v137, 4294901760
    %485 = vmatmul.mubr.f32.gmra.mrb[0].mxu0 %v484
    %v486 = vpop.f32.mrb[0].mxu0
    %v487 = vadd.f32 %v261, %v486
    %v488 = vpop.f32.mrb[0].mxu0
    %489 = vmatprep.mubr.f32.mxu0 0.0
    %v490 = vand.u32 %v140, 4294901760
    %491 = vmatmul.mubr.f32.gmra.mrb[0].mxu0 %v490
    %v492 = vpop.f32.mrb[0].mxu0
    %v493 = vadd.f32 %v271, %v492
    %v494 = vpop.f32.mrb[0].mxu0
    %495 = vmatprep.mubr.f32.mxu0 0.0
    %v496 = vand.u32 %v143, 4294901760
    %497 = vmatmul.mubr.f32.gmra.mrb[0].mxu0 %v496
    %v498 = vpop.f32.mrb[0].mxu0
    %v499 = vadd.f32 %v281, %v498
    %v500 = vpop.f32.mrb[0].mxu0
    %501 = vmatprep.mubr.f32.mxu0 0.0
    %v502 = vand.u32 %v146, 4294901760
    %503 = vmatmul.mubr.f32.gmra.mrb[0].mxu0 %v502
    %v504 = vpop.f32.mrb[0].mxu0
    %v505 = vadd.f32 %v291, %v504
    %v506 = vpop.f32.mrb[0].mxu0
    %507 = vmatprep.mubr.f32.mxu0 0.0
    %v508 = vand.u32 %v149, 4294901760
    %509 = vmatmul.mubr.f32.gmra.mrb[0].mxu0 %v508
    %v510 = vpop.f32.mrb[0].mxu0
    %v511 = vadd.f32 %v301, %v510
    %v512 = vpop.f32.mrb[0].mxu0
    %513 = vmatprep.mubr.f32.mxu0 0.0
    %v514 = vand.u32 %v152, 4294901760
    %515 = vmatmul.mubr.f32.gmra.mrb[0].mxu0 %v514
    %v516 = vpop.f32.mrb[0].mxu0
    %v517 = vadd.f32 %v311, %v516
    %v518 = vpop.f32.mrb[0].mxu0
    %519 = vmatprep.mubr.f32.mxu0 0.0
    %v520 = vand.u32 %v155, 4294901760
    %521 = vmatmul.mubr.f32.gmra.mrb[0].mxu0 %v520
    %v522 = vpop.f32.mrb[0].mxu0
    %v523 = vadd.f32 %v321, %v522
    %v524 = vpop.f32.mrb[0].mxu0
    %525 = vmatprep.mubr.f32.mxu0 0.0
    %v526 = vand.u32 %v158, 4294901760
    %527 = vmatmul.mubr.f32.gmra.mrb[0].mxu0 %v526
    %v528 = vpop.f32.mrb[0].mxu0
    %v529 = vadd.f32 %v331, %v528
    %v530 = vpop.f32.mrb[0].mxu0
    %531 = vmatprep.mubr.f32.mxu0 0.0
    %v532 = vand.u32 %v161, 4294901760
    %533 = vmatmul.mubr.f32.gmra.mrb[0].mxu0 %v532
    %v534 = vpop.f32.mrb[0].mxu0
    %v535 = vadd.f32 %v341, %v534
    %v536 = vpop.f32.mrb[0].mxu0
    %537 = vmatprep.mubr.f32.mxu0 0.0
    %v538 = vand.u32 %v164, 4294901760
    %539 = vmatmul.mubr.f32.gmra.mrb[0].mxu0 %v538
    %v540 = vpop.f32.mrb[0].mxu0
    %v541 = vadd.f32 %v351, %v540
    %v542 = vpop.f32.mrb[0].mxu0
    %543 = vmatprep.mubr.f32.mxu0 0.0
    %v544 = vand.u32 %v167, 4294901760
    %545 = vmatmul.mubr.f32.gmra.mrb[0].mxu0 %v544
    %v546 = vpop.f32.mrb[0].mxu0
    %v547 = vadd.f32 %v361, %v546
    %v548 = vpop.f32.mrb[0].mxu0
    %549 = vmatprep.mubr.f32.mxu0 0.0
    %v550 = vand.u32 %v170, 4294901760
    %551 = vmatmul.mubr.f32.gmra.mrb[0].mxu0 %v550
    %v552 = vpop.f32.mrb[0].mxu0
    %v553 = vadd.f32 %v371, %v552
    %v554 = vpop.f32.mrb[0].mxu0
    %555 = vmatprep.mubr.f32.mxu0 0.0
    %v556 = vand.u32 %v173, 4294901760
    %557 = vmatmul.mubr.f32.gmra.mrb[0].mxu0 %v556
    %v558 = vpop.f32.mrb[0].mxu0
    %v559 = vadd.f32 %v381, %v558
    %v560 = vpop.f32.mrb[0].mxu0
    %561 = vmatprep.mubr.f32.mxu0 0.0
    %v562 = vand.u32 %v176, 4294901760
    %563 = vmatmul.mubr.f32.gmra.mrb[0].mxu0 %v562
    %v564 = vpop.f32.mrb[0].mxu0
    %v565 = vadd.f32 %v391, %v564
    %v566 = vpop.f32.mrb[0].mxu0
    %567 = vmatprep.mubr.f32.mxu0 0.0
    %v568 = vand.u32 %v179, 4294901760
    %569 = vmatmul.mubr.f32.gmra.mrb[0].mxu0 %v568
    %v570 = vpop.f32.mrb[0].mxu0
    %v571 = vadd.f32 %v401, %v570
    %v572 = vpop.f32.mrb[0].mxu0
    %573 = vmatprep.mubr.f32.mxu0 0.0
    %v574 = vand.u32 %v182, 4294901760
    %575 = vmatmul.mubr.f32.gmra.mrb[0].mxu0 %v574
    %v576 = vpop.f32.mrb[0].mxu0
    %v577 = vadd.f32 %v411, %v576
    %v578 = vpop.f32.mrb[0].mxu0
    %579 = vdwg.mxu0
    %580 = vmatprep.subr.mxu0 0.0
    %v581 = vand.u32 %v186, 4294901760
    %v582 = vsub.f32 %v186, %v581
    %583 = vmatpush1.msra.mxu0 %v582
    %584 = vmatprep.subr.mxu0 0.0
    %585 = vmatpush1.msra.mxu0 0.0
    %586 = vmatprep.subr.mxu0 0.0
    %587 = vmatpush1.msra.mxu0 0.0
    %588 = vmatprep.subr.mxu0 0.0
    %589 = vmatpush1.msra.mxu0 0.0
    %590 = vmatprep.subr.mxu0 0.0
    %591 = vmatpush1.msra.mxu0 0.0
    %592 = vmatprep.subr.mxu0 0.0
    %593 = vmatpush1.msra.mxu0 0.0
    %594 = vmatprep.subr.mxu0 0.0
    %595 = vmatpush1.msra.mxu0 0.0
    %596 = vmatprep.subr.mxu0 0.0
    %597 = vmatpush1.msra.mxu0 0.0
    %598 = vmatprep.subr.mxu0 0.0
    %599 = vmatpush1.msra.mxu0 0.0
    %600 = vmatprep.subr.mxu0 0.0
    %601 = vmatpush1.msra.mxu0 0.0
    %602 = vmatprep.subr.mxu0 0.0
    %603 = vmatpush1.msra.mxu0 0.0
    %604 = vmatprep.subr.mxu0 0.0
    %605 = vmatpush1.msra.mxu0 0.0
    %606 = vmatprep.subr.mxu0 0.0
    %607 = vmatpush1.msra.mxu0 0.0
    %608 = vmatprep.subr.mxu0 0.0
    %609 = vmatpush1.msra.mxu0 0.0
    %610 = vmatprep.subr.mxu0 0.0
    %611 = vmatpush1.msra.mxu0 0.0
    %612 = vmatprep.subr.mxu0 0.0
    %613 = vmatpush1.msra.mxu0 0.0
    %614 = vmatprep.subr.mxu0 0.0
    %615 = vmatpush1.msra.mxu0 0.0
    %616 = vmatprep.subr.mxu0 0.0
    %617 = vmatpush1.msra.mxu0 0.0
    %618 = vmatprep.subr.mxu0 0.0
    %619 = vmatpush1.msra.mxu0 0.0
    %620 = vmatprep.subr.mxu0 0.0
    %621 = vmatpush1.msra.mxu0 0.0
    %622 = vmatprep.subr.mxu0 0.0
    %623 = vmatpush1.msra.mxu0 0.0
    %624 = vmatprep.subr.mxu0 0.0
    %625 = vmatpush1.msra.mxu0 0.0
    %626 = vmatprep.subr.mxu0 0.0
    %627 = vmatpush1.msra.mxu0 0.0
    %628 = vmatprep.subr.mxu0 0.0
    %629 = vmatpush1.msra.mxu0 0.0
    %630 = vmatprep.subr.mxu0 0.0
    %631 = vmatpush1.msra.mxu0 0.0
    %632 = vmatprep.subr.mxu0 0.0
    %633 = vmatpush1.msra.mxu0 0.0
    %634 = vmatprep.subr.mxu0 0.0
    %635 = vmatpush1.msra.mxu0 0.0
    %636 = vmatprep.subr.mxu0 0.0
    %637 = vmatpush1.msra.mxu0 0.0
    %638 = vmatprep.subr.mxu0 0.0
    %639 = vmatpush1.msra.mxu0 0.0
    %640 = vmatprep.subr.mxu0 0.0
    %641 = vmatpush1.msra.mxu0 0.0
    %642 = vmatprep.subr.mxu0 0.0
    %643 = vmatpush1.msra.mxu0 0.0
    %644 = vmatprep.subr.mxu0 0.0
    %645 = vmatpush1.msra.mxu0 0.0
    %646 = vmatprep.mubr.f32.mxu0 0.0
    %v647 = vand.u32 %v137, 4294901760
    %v648 = vsub.f32 %v137, %v647
    %649 = vmatmul.mubr.f32.gmra.mrb[0].mxu0 %v648
    %v650 = vpop.f32.mrb[0].mxu0
    %v651 = vadd.f32 %v487, %v650
    %v652 = vpop.f32.mrb[0].mxu0
    %653 = vmatprep.mubr.f32.mxu0 0.0
    %v654 = vand.u32 %v140, 4294901760
    %v655 = vsub.f32 %v140, %v654
    %656 = vmatmul.mubr.f32.gmra.mrb[0].mxu0 %v655
    %v657 = vpop.f32.mrb[0].mxu0
    %v658 = vadd.f32 %v493, %v657
    %v659 = vpop.f32.mrb[0].mxu0
    %660 = vmatprep.mubr.f32.mxu0 0.0
    %v661 = vand.u32 %v143, 4294901760
    %v662 = vsub.f32 %v143, %v661
    %663 = vmatmul.mubr.f32.gmra.mrb[0].mxu0 %v662
    %v664 = vpop.f32.mrb[0].mxu0
    %v665 = vadd.f32 %v499, %v664
    %v666 = vpop.f32.mrb[0].mxu0
    %667 = vmatprep.mubr.f32.mxu0 0.0
    %v668 = vand.u32 %v146, 4294901760
    %v669 = vsub.f32 %v146, %v668
    %670 = vmatmul.mubr.f32.gmra.mrb[0].mxu0 %v669
    %v671 = vpop.f32.mrb[0].mxu0
    %v672 = vadd.f32 %v505, %v671
    %v673 = vpop.f32.mrb[0].mxu0
    %674 = vmatprep.mubr.f32.mxu0 0.0
    %v675 = vand.u32 %v149, 4294901760
    %v676 = vsub.f32 %v149, %v675
    %677 = vmatmul.mubr.f32.gmra.mrb[0].mxu0 %v676
    %v678 = vpop.f32.mrb[0].mxu0
    %v679 = vadd.f32 %v511, %v678
    %v680 = vpop.f32.mrb[0].mxu0
    %681 = vmatprep.mubr.f32.mxu0 0.0
    %v682 = vand.u32 %v152, 4294901760
    %v683 = vsub.f32 %v152, %v682
    %684 = vmatmul.mubr.f32.gmra.mrb[0].mxu0 %v683
    %v685 = vpop.f32.mrb[0].mxu0
    %v686 = vadd.f32 %v517, %v685
    %v687 = vpop.f32.mrb[0].mxu0
    %688 = vmatprep.mubr.f32.mxu0 0.0
    %v689 = vand.u32 %v155, 4294901760
    %v690 = vsub.f32 %v155, %v689
    %691 = vmatmul.mubr.f32.gmra.mrb[0].mxu0 %v690
    %v692 = vpop.f32.mrb[0].mxu0
    %v693 = vadd.f32 %v523, %v692
    %v694 = vpop.f32.mrb[0].mxu0
    %695 = vmatprep.mubr.f32.mxu0 0.0
    %v696 = vand.u32 %v158, 4294901760
    %v697 = vsub.f32 %v158, %v696
    %698 = vmatmul.mubr.f32.gmra.mrb[0].mxu0 %v697
    %v699 = vpop.f32.mrb[0].mxu0
    %v700 = vadd.f32 %v529, %v699
    %v701 = vpop.f32.mrb[0].mxu0
    %702 = vmatprep.mubr.f32.mxu0 0.0
    %v703 = vand.u32 %v161, 4294901760
    %v704 = vsub.f32 %v161, %v703
    %705 = vmatmul.mubr.f32.gmra.mrb[0].mxu0 %v704
    %v706 = vpop.f32.mrb[0].mxu0
    %v707 = vadd.f32 %v535, %v706
    %v708 = vpop.f32.mrb[0].mxu0
    %709 = vmatprep.mubr.f32.mxu0 0.0
    %v710 = vand.u32 %v164, 4294901760
    %v711 = vsub.f32 %v164, %v710
    %712 = vmatmul.mubr.f32.gmra.mrb[0].mxu0 %v711
    %v713 = vpop.f32.mrb[0].mxu0
    %v714 = vadd.f32 %v541, %v713
    %v715 = vpop.f32.mrb[0].mxu0
    %716 = vmatprep.mubr.f32.mxu0 0.0
    %v717 = vand.u32 %v167, 4294901760
    %v718 = vsub.f32 %v167, %v717
    %719 = vmatmul.mubr.f32.gmra.mrb[0].mxu0 %v718
    %v720 = vpop.f32.mrb[0].mxu0
    %v721 = vadd.f32 %v547, %v720
    %v722 = vpop.f32.mrb[0].mxu0
    %723 = vmatprep.mubr.f32.mxu0 0.0
    %v724 = vand.u32 %v170, 4294901760
    %v725 = vsub.f32 %v170, %v724
    %726 = vmatmul.mubr.f32.gmra.mrb[0].mxu0 %v725
    %v727 = vpop.f32.mrb[0].mxu0
    %v728 = vadd.f32 %v553, %v727
    %v729 = vpop.f32.mrb[0].mxu0
    %730 = vmatprep.mubr.f32.mxu0 0.0
    %v731 = vand.u32 %v173, 4294901760
    %v732 = vsub.f32 %v173, %v731
    %733 = vmatmul.mubr.f32.gmra.mrb[0].mxu0 %v732
    %v734 = vpop.f32.mrb[0].mxu0
    %v735 = vadd.f32 %v559, %v734
    %v736 = vpop.f32.mrb[0].mxu0
    %737 = vmatprep.mubr.f32.mxu0 0.0
    %v738 = vand.u32 %v176, 4294901760
    %v739 = vsub.f32 %v176, %v738
    %740 = vmatmul.mubr.f32.gmra.mrb[0].mxu0 %v739
    %v741 = vpop.f32.mrb[0].mxu0
    %v742 = vadd.f32 %v565, %v741
    %v743 = vpop.f32.mrb[0].mxu0
    %744 = vmatprep.mubr.f32.mxu0 0.0
    %v745 = vand.u32 %v179, 4294901760
    %v746 = vsub.f32 %v179, %v745
    %747 = vmatmul.mubr.f32.gmra.mrb[0].mxu0 %v746
    %v748 = vpop.f32.mrb[0].mxu0
    %v749 = vadd.f32 %v571, %v748
    %v750 = vpop.f32.mrb[0].mxu0
    %751 = vmatprep.mubr.f32.mxu0 0.0
    %v752 = vand.u32 %v182, 4294901760
    %v753 = vsub.f32 %v182, %v752
    %754 = vmatmul.mubr.f32.gmra.mrb[0].mxu0 %v753
    %v755 = vpop.f32.mrb[0].mxu0
    %v756 = vadd.f32 %v577, %v755
    %v757 = vpop.f32.mrb[0].mxu0
    %758 = vdwg.mxu0
    %759 = vmatprep.subr.mxu0 0.0
    %v760 = vand.u32 %v186, 4294901760
    %761 = vmatpush1.msra.mxu0 %v760
    %762 = vmatprep.subr.mxu0 0.0
    %763 = vmatpush1.msra.mxu0 0.0
    %764 = vmatprep.subr.mxu0 0.0
    %765 = vmatpush1.msra.mxu0 0.0
    %766 = vmatprep.subr.mxu0 0.0
    %767 = vmatpush1.msra.mxu0 0.0
    %768 = vmatprep.subr.mxu0 0.0
    %769 = vmatpush1.msra.mxu0 0.0
    %770 = vmatprep.subr.mxu0 0.0
    %771 = vmatpush1.msra.mxu0 0.0
    %772 = vmatprep.subr.mxu0 0.0
    %773 = vmatpush1.msra.mxu0 0.0
    %774 = vmatprep.subr.mxu0 0.0
    %775 = vmatpush1.msra.mxu0 0.0
    %776 = vmatprep.subr.mxu0 0.0
    %777 = vmatpush1.msra.mxu0 0.0
    %778 = vmatprep.subr.mxu0 0.0
    %779 = vmatpush1.msra.mxu0 0.0
    %780 = vmatprep.subr.mxu0 0.0
    %781 = vmatpush1.msra.mxu0 0.0
    %782 = vmatprep.subr.mxu0 0.0
    %783 = vmatpush1.msra.mxu0 0.0
    %784 = vmatprep.subr.mxu0 0.0
    %785 = vmatpush1.msra.mxu0 0.0
    %786 = vmatprep.subr.mxu0 0.0
    %787 = vmatpush1.msra.mxu0 0.0
    %788 = vmatprep.subr.mxu0 0.0
    %789 = vmatpush1.msra.mxu0 0.0
    %790 = vmatprep.subr.mxu0 0.0
    %791 = vmatpush1.msra.mxu0 0.0
    %792 = vmatprep.subr.mxu0 0.0
    %793 = vmatpush1.msra.mxu0 0.0
    %794 = vmatprep.subr.mxu0 0.0
    %795 = vmatpush1.msra.mxu0 0.0
    %796 = vmatprep.subr.mxu0 0.0
    %797 = vmatpush1.msra.mxu0 0.0
    %798 = vmatprep.subr.mxu0 0.0
    %799 = vmatpush1.msra.mxu0 0.0
    %800 = vmatprep.subr.mxu0 0.0
    %801 = vmatpush1.msra.mxu0 0.0
    %802 = vmatprep.subr.mxu0 0.0
    %803 = vmatpush1.msra.mxu0 0.0
    %804 = vmatprep.subr.mxu0 0.0
    %805 = vmatpush1.msra.mxu0 0.0
    %806 = vmatprep.subr.mxu0 0.0
    %807 = vmatpush1.msra.mxu0 0.0
    %808 = vmatprep.subr.mxu0 0.0
    %809 = vmatpush1.msra.mxu0 0.0
    %810 = vmatprep.subr.mxu0 0.0
    %811 = vmatpush1.msra.mxu0 0.0
    %812 = vmatprep.subr.mxu0 0.0
    %813 = vmatpush1.msra.mxu0 0.0
    %814 = vmatprep.subr.mxu0 0.0
    %815 = vmatpush1.msra.mxu0 0.0
    %816 = vmatprep.subr.mxu0 0.0
    %817 = vmatpush1.msra.mxu0 0.0
    %818 = vmatprep.subr.mxu0 0.0
    %819 = vmatpush1.msra.mxu0 0.0
    %820 = vmatprep.subr.mxu0 0.0
    %821 = vmatpush1.msra.mxu0 0.0
    %822 = vmatprep.subr.mxu0 0.0
    %823 = vmatpush1.msra.mxu0 0.0
    %824 = vmatprep.mubr.f32.mxu0 0.0
    %v825 = vand.u32 %v137, 4294901760
    %v826 = vsub.f32 %v137, %v825
    %v827 = vand.u32 %v826, 4294901760
    %828 = vmatmul.mubr.f32.gmra.mrb[0].mxu0 %v827
    %v829 = vpop.f32.mrb[0].mxu0
    %v830 = vadd.f32 %v651, %v829
    %v831 = vpop.f32.mrb[0].mxu0
    %832 = vmatprep.mubr.f32.mxu0 0.0
    %v833 = vand.u32 %v140, 4294901760
    %v834 = vsub.f32 %v140, %v833
    %v835 = vand.u32 %v834, 4294901760
    %836 = vmatmul.mubr.f32.gmra.mrb[0].mxu0 %v835
    %v837 = vpop.f32.mrb[0].mxu0
    %v838 = vadd.f32 %v658, %v837
    %v839 = vpop.f32.mrb[0].mxu0
    %840 = vmatprep.mubr.f32.mxu0 0.0
    %v841 = vand.u32 %v143, 4294901760
    %v842 = vsub.f32 %v143, %v841
    %v843 = vand.u32 %v842, 4294901760
    %844 = vmatmul.mubr.f32.gmra.mrb[0].mxu0 %v843
    %v845 = vpop.f32.mrb[0].mxu0
    %v846 = vadd.f32 %v665, %v845
    %v847 = vpop.f32.mrb[0].mxu0
    %848 = vmatprep.mubr.f32.mxu0 0.0
    %v849 = vand.u32 %v146, 4294901760
    %v850 = vsub.f32 %v146, %v849
    %v851 = vand.u32 %v850, 4294901760
    %852 = vmatmul.mubr.f32.gmra.mrb[0].mxu0 %v851
    %v853 = vpop.f32.mrb[0].mxu0
    %v854 = vadd.f32 %v672, %v853
    %v855 = vpop.f32.mrb[0].mxu0
    %856 = vmatprep.mubr.f32.mxu0 0.0
    %v857 = vand.u32 %v149, 4294901760
    %v858 = vsub.f32 %v149, %v857
    %v859 = vand.u32 %v858, 4294901760
    %860 = vmatmul.mubr.f32.gmra.mrb[0].mxu0 %v859
    %v861 = vpop.f32.mrb[0].mxu0
    %v862 = vadd.f32 %v679, %v861
    %v863 = vpop.f32.mrb[0].mxu0
    %864 = vmatprep.mubr.f32.mxu0 0.0
    %v865 = vand.u32 %v152, 4294901760
    %v866 = vsub.f32 %v152, %v865
    %v867 = vand.u32 %v866, 4294901760
    %868 = vmatmul.mubr.f32.gmra.mrb[0].mxu0 %v867
    %v869 = vpop.f32.mrb[0].mxu0
    %v870 = vadd.f32 %v686, %v869
    %v871 = vpop.f32.mrb[0].mxu0
    %872 = vmatprep.mubr.f32.mxu0 0.0
    %v873 = vand.u32 %v155, 4294901760
    %v874 = vsub.f32 %v155, %v873
    %v875 = vand.u32 %v874, 4294901760
    %876 = vmatmul.mubr.f32.gmra.mrb[0].mxu0 %v875
    %v877 = vpop.f32.mrb[0].mxu0
    %v878 = vadd.f32 %v693, %v877
    %v879 = vpop.f32.mrb[0].mxu0
    %880 = vmatprep.mubr.f32.mxu0 0.0
    %v881 = vand.u32 %v158, 4294901760
    %v882 = vsub.f32 %v158, %v881
    %v883 = vand.u32 %v882, 4294901760
    %884 = vmatmul.mubr.f32.gmra.mrb[0].mxu0 %v883
    %v885 = vpop.f32.mrb[0].mxu0
    %v886 = vadd.f32 %v700, %v885
    %v887 = vpop.f32.mrb[0].mxu0
    %888 = vmatprep.mubr.f32.mxu0 0.0
    %v889 = vand.u32 %v161, 4294901760
    %v890 = vsub.f32 %v161, %v889
    %v891 = vand.u32 %v890, 4294901760
    %892 = vmatmul.mubr.f32.gmra.mrb[0].mxu0 %v891
    %v893 = vpop.f32.mrb[0].mxu0
    %v894 = vadd.f32 %v707, %v893
    %v895 = vpop.f32.mrb[0].mxu0
    %896 = vmatprep.mubr.f32.mxu0 0.0
    %v897 = vand.u32 %v164, 4294901760
    %v898 = vsub.f32 %v164, %v897
    %v899 = vand.u32 %v898, 4294901760
    %900 = vmatmul.mubr.f32.gmra.mrb[0].mxu0 %v899
    %v901 = vpop.f32.mrb[0].mxu0
    %v902 = vadd.f32 %v714, %v901
    %v903 = vpop.f32.mrb[0].mxu0
    %904 = vmatprep.mubr.f32.mxu0 0.0
    %v905 = vand.u32 %v167, 4294901760
    %v906 = vsub.f32 %v167, %v905
    %v907 = vand.u32 %v906, 4294901760
    %908 = vmatmul.mubr.f32.gmra.mrb[0].mxu0 %v907
    %v909 = vpop.f32.mrb[0].mxu0
    %v910 = vadd.f32 %v721, %v909
    %v911 = vpop.f32.mrb[0].mxu0
    %912 = vmatprep.mubr.f32.mxu0 0.0
    %v913 = vand.u32 %v170, 4294901760
    %v914 = vsub.f32 %v170, %v913
    %v915 = vand.u32 %v914, 4294901760
    %916 = vmatmul.mubr.f32.gmra.mrb[0].mxu0 %v915
    %v917 = vpop.f32.mrb[0].mxu0
    %v918 = vadd.f32 %v728, %v917
    %v919 = vpop.f32.mrb[0].mxu0
    %920 = vmatprep.mubr.f32.mxu0 0.0
    %v921 = vand.u32 %v173, 4294901760
    %v922 = vsub.f32 %v173, %v921
    %v923 = vand.u32 %v922, 4294901760
    %924 = vmatmul.mubr.f32.gmra.mrb[0].mxu0 %v923
    %v925 = vpop.f32.mrb[0].mxu0
    %v926 = vadd.f32 %v735, %v925
    %v927 = vpop.f32.mrb[0].mxu0
    %928 = vmatprep.mubr.f32.mxu0 0.0
    %v929 = vand.u32 %v176, 4294901760
    %v930 = vsub.f32 %v176, %v929
    %v931 = vand.u32 %v930, 4294901760
    %932 = vmatmul.mubr.f32.gmra.mrb[0].mxu0 %v931
    %v933 = vpop.f32.mrb[0].mxu0
    %v934 = vadd.f32 %v742, %v933
    %v935 = vpop.f32.mrb[0].mxu0
    %936 = vmatprep.mubr.f32.mxu0 0.0
    %v937 = vand.u32 %v179, 4294901760
    %v938 = vsub.f32 %v179, %v937
    %v939 = vand.u32 %v938, 4294901760
    %940 = vmatmul.mubr.f32.gmra.mrb[0].mxu0 %v939
    %v941 = vpop.f32.mrb[0].mxu0
    %v942 = vadd.f32 %v749, %v941
    %v943 = vpop.f32.mrb[0].mxu0
    %944 = vmatprep.mubr.f32.mxu0 0.0
    %v945 = vand.u32 %v182, 4294901760
    %v946 = vsub.f32 %v182, %v945
    %v947 = vand.u32 %v946, 4294901760
    %948 = vmatmul.mubr.f32.gmra.mrb[0].mxu0 %v947
    %v949 = vpop.f32.mrb[0].mxu0
    %v950 = vadd.f32 %v756, %v949
    %v951 = vpop.f32.mrb[0].mxu0
    %952 = vdwg.mxu0
    %953 = vmatprep.subr.mxu0 0.0
    %v954 = vand.u32 %v186, 4294901760
    %v955 = vsub.f32 %v186, %v954
    %v956 = vand.u32 %v955, 4294901760
    %957 = vmatpush1.msra.mxu0 %v956
    %958 = vmatprep.subr.mxu0 0.0
    %959 = vmatpush1.msra.mxu0 0.0
    %960 = vmatprep.subr.mxu0 0.0
    %961 = vmatpush1.msra.mxu0 0.0
    %962 = vmatprep.subr.mxu0 0.0
    %963 = vmatpush1.msra.mxu0 0.0
    %964 = vmatprep.subr.mxu0 0.0
    %965 = vmatpush1.msra.mxu0 0.0
    %966 = vmatprep.subr.mxu0 0.0
    %967 = vmatpush1.msra.mxu0 0.0
    %968 = vmatprep.subr.mxu0 0.0
    %969 = vmatpush1.msra.mxu0 0.0
    %970 = vmatprep.subr.mxu0 0.0
    %971 = vmatpush1.msra.mxu0 0.0
    %972 = vmatprep.subr.mxu0 0.0
    %973 = vmatpush1.msra.mxu0 0.0
    %974 = vmatprep.subr.mxu0 0.0
    %975 = vmatpush1.msra.mxu0 0.0
    %976 = vmatprep.subr.mxu0 0.0
    %977 = vmatpush1.msra.mxu0 0.0
    %978 = vmatprep.subr.mxu0 0.0
    %979 = vmatpush1.msra.mxu0 0.0
    %980 = vmatprep.subr.mxu0 0.0
    %981 = vmatpush1.msra.mxu0 0.0
    %982 = vmatprep.subr.mxu0 0.0
    %983 = vmatpush1.msra.mxu0 0.0
    %984 = vmatprep.subr.mxu0 0.0
    %985 = vmatpush1.msra.mxu0 0.0
    %986 = vmatprep.subr.mxu0 0.0
    %987 = vmatpush1.msra.mxu0 0.0
    %988 = vmatprep.subr.mxu0 0.0
    %989 = vmatpush1.msra.mxu0 0.0
    %990 = vmatprep.subr.mxu0 0.0
    %991 = vmatpush1.msra.mxu0 0.0
    %992 = vmatprep.subr.mxu0 0.0
    %993 = vmatpush1.msra.mxu0 0.0
    %994 = vmatprep.subr.mxu0 0.0
    %995 = vmatpush1.msra.mxu0 0.0
    %996 = vmatprep.subr.mxu0 0.0
    %997 = vmatpush1.msra.mxu0 0.0
    %998 = vmatprep.subr.mxu0 0.0
    %999 = vmatpush1.msra.mxu0 0.0
    %1000 = vmatprep.subr.mxu0 0.0
    %1001 = vmatpush1.msra.mxu0 0.0
    %1002 = vmatprep.subr.mxu0 0.0
    %1003 = vmatpush1.msra.mxu0 0.0
    %1004 = vmatprep.subr.mxu0 0.0
    %1005 = vmatpush1.msra.mxu0 0.0
    %1006 = vmatprep.subr.mxu0 0.0
    %1007 = vmatpush1.msra.mxu0 0.0
    %1008 = vmatprep.subr.mxu0 0.0
    %1009 = vmatpush1.msra.mxu0 0.0
    %1010 = vmatprep.subr.mxu0 0.0
    %1011 = vmatpush1.msra.mxu0 0.0
    %1012 = vmatprep.subr.mxu0 0.0
    %1013 = vmatpush1.msra.mxu0 0.0
    %1014 = vmatprep.subr.mxu0 0.0
    %1015 = vmatpush1.msra.mxu0 0.0
    %1016 = vmatprep.subr.mxu0 0.0
    %1017 = vmatpush1.msra.mxu0 0.0
    %1018 = vmatprep.subr.mxu0 0.0
    %1019 = vmatpush1.msra.mxu0 0.0
    %1020 = vmatprep.mubr.f32.mxu0 0.0
    %v1021 = vand.u32 %v137, 4294901760
    %1022 = vmatmul.mubr.f32.gmra.mrb[0].mxu0 %v1021
    %v1023 = vpop.f32.mrb[0].mxu0
    %v1024 = vadd.f32 %v830, %v1023
    %v1025 = vpop.f32.mrb[0].mxu0
    %1026 = vmatprep.mubr.f32.mxu0 0.0
    %v1027 = vand.u32 %v140, 4294901760
    %1028 = vmatmul.mubr.f32.gmra.mrb[0].mxu0 %v1027
    %v1029 = vpop.f32.mrb[0].mxu0
    %v1030 = vadd.f32 %v838, %v1029
    %v1031 = vpop.f32.mrb[0].mxu0
    %1032 = vmatprep.mubr.f32.mxu0 0.0
    %v1033 = vand.u32 %v143, 4294901760
    %1034 = vmatmul.mubr.f32.gmra.mrb[0].mxu0 %v1033
    %v1035 = vpop.f32.mrb[0].mxu0
    %v1036 = vadd.f32 %v846, %v1035
    %v1037 = vpop.f32.mrb[0].mxu0
    %1038 = vmatprep.mubr.f32.mxu0 0.0
    %v1039 = vand.u32 %v146, 4294901760
    %1040 = vmatmul.mubr.f32.gmra.mrb[0].mxu0 %v1039
    %v1041 = vpop.f32.mrb[0].mxu0
    %v1042 = vadd.f32 %v854, %v1041
    %v1043 = vpop.f32.mrb[0].mxu0
    %1044 = vmatprep.mubr.f32.mxu0 0.0
    %v1045 = vand.u32 %v149, 4294901760
    %1046 = vmatmul.mubr.f32.gmra.mrb[0].mxu0 %v1045
    %v1047 = vpop.f32.mrb[0].mxu0
    %v1048 = vadd.f32 %v862, %v1047
    %v1049 = vpop.f32.mrb[0].mxu0
    %1050 = vmatprep.mubr.f32.mxu0 0.0
    %v1051 = vand.u32 %v152, 4294901760
    %1052 = vmatmul.mubr.f32.gmra.mrb[0].mxu0 %v1051
    %v1053 = vpop.f32.mrb[0].mxu0
    %v1054 = vadd.f32 %v870, %v1053
    %v1055 = vpop.f32.mrb[0].mxu0
    %1056 = vmatprep.mubr.f32.mxu0 0.0
    %v1057 = vand.u32 %v155, 4294901760
    %1058 = vmatmul.mubr.f32.gmra.mrb[0].mxu0 %v1057
    %v1059 = vpop.f32.mrb[0].mxu0
    %v1060 = vadd.f32 %v878, %v1059
    %v1061 = vpop.f32.mrb[0].mxu0
    %1062 = vmatprep.mubr.f32.mxu0 0.0
    %v1063 = vand.u32 %v158, 4294901760
    %1064 = vmatmul.mubr.f32.gmra.mrb[0].mxu0 %v1063
    %v1065 = vpop.f32.mrb[0].mxu0
    %v1066 = vadd.f32 %v886, %v1065
    %v1067 = vpop.f32.mrb[0].mxu0
    %1068 = vmatprep.mubr.f32.mxu0 0.0
    %v1069 = vand.u32 %v161, 4294901760
    %1070 = vmatmul.mubr.f32.gmra.mrb[0].mxu0 %v1069
    %v1071 = vpop.f32.mrb[0].mxu0
    %v1072 = vadd.f32 %v894, %v1071
    %v1073 = vpop.f32.mrb[0].mxu0
    %1074 = vmatprep.mubr.f32.mxu0 0.0
    %v1075 = vand.u32 %v164, 4294901760
    %1076 = vmatmul.mubr.f32.gmra.mrb[0].mxu0 %v1075
    %v1077 = vpop.f32.mrb[0].mxu0
    %v1078 = vadd.f32 %v902, %v1077
    %v1079 = vpop.f32.mrb[0].mxu0
    %1080 = vmatprep.mubr.f32.mxu0 0.0
    %v1081 = vand.u32 %v167, 4294901760
    %1082 = vmatmul.mubr.f32.gmra.mrb[0].mxu0 %v1081
    %v1083 = vpop.f32.mrb[0].mxu0
    %v1084 = vadd.f32 %v910, %v1083
    %v1085 = vpop.f32.mrb[0].mxu0
    %1086 = vmatprep.mubr.f32.mxu0 0.0
    %v1087 = vand.u32 %v170, 4294901760
    %1088 = vmatmul.mubr.f32.gmra.mrb[0].mxu0 %v1087
    %v1089 = vpop.f32.mrb[0].mxu0
    %v1090 = vadd.f32 %v918, %v1089
    %v1091 = vpop.f32.mrb[0].mxu0
    %1092 = vmatprep.mubr.f32.mxu0 0.0
    %v1093 = vand.u32 %v173, 4294901760
    %1094 = vmatmul.mubr.f32.gmra.mrb[0].mxu0 %v1093
    %v1095 = vpop.f32.mrb[0].mxu0
    %v1096 = vadd.f32 %v926, %v1095
    %v1097 = vpop.f32.mrb[0].mxu0
    %1098 = vmatprep.mubr.f32.mxu0 0.0
    %v1099 = vand.u32 %v176, 4294901760
    %1100 = vmatmul.mubr.f32.gmra.mrb[0].mxu0 %v1099
    %v1101 = vpop.f32.mrb[0].mxu0
    %v1102 = vadd.f32 %v934, %v1101
    %v1103 = vpop.f32.mrb[0].mxu0
    %1104 = vmatprep.mubr.f32.mxu0 0.0
    %v1105 = vand.u32 %v179, 4294901760
    %1106 = vmatmul.mubr.f32.gmra.mrb[0].mxu0 %v1105
    %v1107 = vpop.f32.mrb[0].mxu0
    %v1108 = vadd.f32 %v942, %v1107
    %v1109 = vpop.f32.mrb[0].mxu0
    %1110 = vmatprep.mubr.f32.mxu0 0.0
    %v1111 = vand.u32 %v182, 4294901760
    %1112 = vmatmul.mubr.f32.gmra.mrb[0].mxu0 %v1111
    %v1113 = vpop.f32.mrb[0].mxu0
    %v1114 = vadd.f32 %v950, %v1113
    %v1115 = vpop.f32.mrb[0].mxu0
    %1116 = vdwg.mxu0
    %1117 = vmatprep.subr.mxu0 0.0
    %v1118 = vand.u32 %v186, 4294901760
    %1119 = vmatpush1.msra.mxu0 %v1118
    %1120 = vmatprep.subr.mxu0 0.0
    %1121 = vmatpush1.msra.mxu0 0.0
    %1122 = vmatprep.subr.mxu0 0.0
    %1123 = vmatpush1.msra.mxu0 0.0
    %1124 = vmatprep.subr.mxu0 0.0
    %1125 = vmatpush1.msra.mxu0 0.0
    %1126 = vmatprep.subr.mxu0 0.0
    %1127 = vmatpush1.msra.mxu0 0.0
    %1128 = vmatprep.subr.mxu0 0.0
    %1129 = vmatpush1.msra.mxu0 0.0
    %1130 = vmatprep.subr.mxu0 0.0
    %1131 = vmatpush1.msra.mxu0 0.0
    %1132 = vmatprep.subr.mxu0 0.0
    %1133 = vmatpush1.msra.mxu0 0.0
    %1134 = vmatprep.subr.mxu0 0.0
    %1135 = vmatpush1.msra.mxu0 0.0
    %1136 = vmatprep.subr.mxu0 0.0
    %1137 = vmatpush1.msra.mxu0 0.0
    %1138 = vmatprep.subr.mxu0 0.0
    %1139 = vmatpush1.msra.mxu0 0.0
    %1140 = vmatprep.subr.mxu0 0.0
    %1141 = vmatpush1.msra.mxu0 0.0
    %1142 = vmatprep.subr.mxu0 0.0
    %1143 = vmatpush1.msra.mxu0 0.0
    %1144 = vmatprep.subr.mxu0 0.0
    %1145 = vmatpush1.msra.mxu0 0.0
    %1146 = vmatprep.subr.mxu0 0.0
    %1147 = vmatpush1.msra.mxu0 0.0
    %1148 = vmatprep.subr.mxu0 0.0
    %1149 = vmatpush1.msra.mxu0 0.0
    %1150 = vmatprep.subr.mxu0 0.0
    %1151 = vmatpush1.msra.mxu0 0.0
    %1152 = vmatprep.subr.mxu0 0.0
    %1153 = vmatpush1.msra.mxu0 0.0
    %1154 = vmatprep.subr.mxu0 0.0
    %1155 = vmatpush1.msra.mxu0 0.0
    %1156 = vmatprep.subr.mxu0 0.0
    %1157 = vmatpush1.msra.mxu0 0.0
    %1158 = vmatprep.subr.mxu0 0.0
    %1159 = vmatpush1.msra.mxu0 0.0
    %1160 = vmatprep.subr.mxu0 0.0
    %1161 = vmatpush1.msra.mxu0 0.0
    %1162 = vmatprep.subr.mxu0 0.0
    %1163 = vmatpush1.msra.mxu0 0.0
    %1164 = vmatprep.subr.mxu0 0.0
    %1165 = vmatpush1.msra.mxu0 0.0
    %1166 = vmatprep.subr.mxu0 0.0
    %1167 = vmatpush1.msra.mxu0 0.0
    %1168 = vmatprep.subr.mxu0 0.0
    %1169 = vmatpush1.msra.mxu0 0.0
    %1170 = vmatprep.subr.mxu0 0.0
    %1171 = vmatpush1.msra.mxu0 0.0
    %1172 = vmatprep.subr.mxu0 0.0
    %1173 = vmatpush1.msra.mxu0 0.0
    %1174 = vmatprep.subr.mxu0 0.0
    %1175 = vmatpush1.msra.mxu0 0.0
    %1176 = vmatprep.subr.mxu0 0.0
    %1177 = vmatpush1.msra.mxu0 0.0
    %1178 = vmatprep.subr.mxu0 0.0
    %1179 = vmatpush1.msra.mxu0 0.0
    %1180 = vmatprep.subr.mxu0 0.0
    %1181 = vmatpush1.msra.mxu0 0.0
    %1182 = vmatprep.mubr.f32.mxu0 0.0
    %v1183 = vand.u32 %v137, 4294901760
    %1184 = vmatmul.mubr.f32.gmra.mrb[0].mxu0 %v1183
    %v1185 = vpop.f32.mrb[0].mxu0
    %v1186 = vadd.f32 %v1024, %v1185
    %v1187 = vpop.f32.mrb[0].mxu0
    %1188 = vmatprep.mubr.f32.mxu0 0.0
    %v1189 = vand.u32 %v140, 4294901760
    %1190 = vmatmul.mubr.f32.gmra.mrb[0].mxu0 %v1189
    %v1191 = vpop.f32.mrb[0].mxu0
    %v1192 = vadd.f32 %v1030, %v1191
    %v1193 = vpop.f32.mrb[0].mxu0
    %1194 = vmatprep.mubr.f32.mxu0 0.0
    %v1195 = vand.u32 %v143, 4294901760
    %1196 = vmatmul.mubr.f32.gmra.mrb[0].mxu0 %v1195
    %v1197 = vpop.f32.mrb[0].mxu0
    %v1198 = vadd.f32 %v1036, %v1197
    %v1199 = vpop.f32.mrb[0].mxu0
    %1200 = vmatprep.mubr.f32.mxu0 0.0
    %v1201 = vand.u32 %v146, 4294901760
    %1202 = vmatmul.mubr.f32.gmra.mrb[0].mxu0 %v1201
    %v1203 = vpop.f32.mrb[0].mxu0
    %v1204 = vadd.f32 %v1042, %v1203
    %v1205 = vpop.f32.mrb[0].mxu0
    %1206 = vmatprep.mubr.f32.mxu0 0.0
    %v1207 = vand.u32 %v149, 4294901760
    %1208 = vmatmul.mubr.f32.gmra.mrb[0].mxu0 %v1207
    %v1209 = vpop.f32.mrb[0].mxu0
    %v1210 = vadd.f32 %v1048, %v1209
    %v1211 = vpop.f32.mrb[0].mxu0
    %1212 = vmatprep.mubr.f32.mxu0 0.0
    %v1213 = vand.u32 %v152, 4294901760
    %1214 = vmatmul.mubr.f32.gmra.mrb[0].mxu0 %v1213
    %v1215 = vpop.f32.mrb[0].mxu0
    %v1216 = vadd.f32 %v1054, %v1215
    %v1217 = vpop.f32.mrb[0].mxu0
    %1218 = vmatprep.mubr.f32.mxu0 0.0
    %v1219 = vand.u32 %v155, 4294901760
    %1220 = vmatmul.mubr.f32.gmra.mrb[0].mxu0 %v1219
    %v1221 = vpop.f32.mrb[0].mxu0
    %v1222 = vadd.f32 %v1060, %v1221
    %v1223 = vpop.f32.mrb[0].mxu0
    %1224 = vmatprep.mubr.f32.mxu0 0.0
    %v1225 = vand.u32 %v158, 4294901760
    %1226 = vmatmul.mubr.f32.gmra.mrb[0].mxu0 %v1225
    %v1227 = vpop.f32.mrb[0].mxu0
    %v1228 = vadd.f32 %v1066, %v1227
    %v1229 = vpop.f32.mrb[0].mxu0
    %1230 = vmatprep.mubr.f32.mxu0 0.0
    %v1231 = vand.u32 %v161, 4294901760
    %1232 = vmatmul.mubr.f32.gmra.mrb[0].mxu0 %v1231
    %v1233 = vpop.f32.mrb[0].mxu0
    %v1234 = vadd.f32 %v1072, %v1233
    %v1235 = vpop.f32.mrb[0].mxu0
    %1236 = vmatprep.mubr.f32.mxu0 0.0
    %v1237 = vand.u32 %v164, 4294901760
    %1238 = vmatmul.mubr.f32.gmra.mrb[0].mxu0 %v1237
    %v1239 = vpop.f32.mrb[0].mxu0
    %v1240 = vadd.f32 %v1078, %v1239
    %v1241 = vpop.f32.mrb[0].mxu0
    %1242 = vmatprep.mubr.f32.mxu0 0.0
    %v1243 = vand.u32 %v167, 4294901760
    %1244 = vmatmul.mubr.f32.gmra.mrb[0].mxu0 %v1243
    %v1245 = vpop.f32.mrb[0].mxu0
    %v1246 = vadd.f32 %v1084, %v1245
    %v1247 = vpop.f32.mrb[0].mxu0
    %1248 = vmatprep.mubr.f32.mxu0 0.0
    %v1249 = vand.u32 %v170, 4294901760
    %1250 = vmatmul.mubr.f32.gmra.mrb[0].mxu0 %v1249
    %v1251 = vpop.f32.mrb[0].mxu0
    %v1252 = vadd.f32 %v1090, %v1251
    %v1253 = vpop.f32.mrb[0].mxu0
    %1254 = vmatprep.mubr.f32.mxu0 0.0
    %v1255 = vand.u32 %v173, 4294901760
    %1256 = vmatmul.mubr.f32.gmra.mrb[0].mxu0 %v1255
    %v1257 = vpop.f32.mrb[0].mxu0
    %v1258 = vadd.f32 %v1096, %v1257
    %v1259 = vpop.f32.mrb[0].mxu0
    %1260 = vmatprep.mubr.f32.mxu0 0.0
    %v1261 = vand.u32 %v176, 4294901760
    %1262 = vmatmul.mubr.f32.gmra.mrb[0].mxu0 %v1261
    %v1263 = vpop.f32.mrb[0].mxu0
    %v1264 = vadd.f32 %v1102, %v1263
    %v1265 = vpop.f32.mrb[0].mxu0
    %1266 = vmatprep.mubr.f32.mxu0 0.0
    %v1267 = vand.u32 %v179, 4294901760
    %1268 = vmatmul.mubr.f32.gmra.mrb[0].mxu0 %v1267
    %v1269 = vpop.f32.mrb[0].mxu0
    %v1270 = vadd.f32 %v1108, %v1269
    %v1271 = vpop.f32.mrb[0].mxu0
    %1272 = vmatprep.mubr.f32.mxu0 0.0
    %v1273 = vand.u32 %v182, 4294901760
    %1274 = vmatmul.mubr.f32.gmra.mrb[0].mxu0 %v1273
    %v1275 = vpop.f32.mrb[0].mxu0
    %v1276 = vadd.f32 %v1114, %v1275
    %v1277 = vpop.f32.mrb[0].mxu0
    %1278 = vdwg.mxu0
    %v1279 = vmax.f32 %v1186, 0.0
    %v1280 = vmax.f32 %v1192, 0.0
    %v1281 = vmax.f32 %v1198, 0.0
    %v1282 = vmax.f32 %v1204, 0.0
    %v1283 = vmax.f32 %v1210, 0.0
    %v1284 = vmax.f32 %v1216, 0.0
    %v1285 = vmax.f32 %v1222, 0.0
    %v1286 = vmax.f32 %v1228, 0.0
    %v1287 = vmax.f32 %v1234, 0.0
    %v1288 = vmax.f32 %v1240, 0.0
    %v1289 = vmax.f32 %v1246, 0.0
    %v1290 = vmax.f32 %v1252, 0.0
    %v1291 = vmax.f32 %v1258, 0.0
    %v1292 = vmax.f32 %v1264, 0.0
    %v1293 = vmax.f32 %v1270, 0.0
    %v1294 = vmax.f32 %v1276, 0.0
    %v1295 = vand.u32 2147483647, %v1186
    %v1296 = vand.u32 2147483647, %v1192
    %v1297 = vand.u32 2147483647, %v1198
    %v1298 = vand.u32 2147483647, %v1204
    %v1299 = vand.u32 2147483647, %v1210
    %v1300 = vand.u32 2147483647, %v1216
    %v1301 = vand.u32 2147483647, %v1222
    %v1302 = vand.u32 2147483647, %v1228
    %v1303 = vand.u32 2147483647, %v1234
    %v1304 = vand.u32 2147483647, %v1240
    %v1305 = vand.u32 2147483647, %v1246
    %v1306 = vand.u32 2147483647, %v1252
    %v1307 = vand.u32 2147483647, %v1258
    %v1308 = vand.u32 2147483647, %v1264
    %v1309 = vand.u32 2147483647, %v1270
    %v1310 = vand.u32 2147483647, %v1276
    %v1311 = vsub.f32 0.0, %v1295
    %v1312 = vsub.f32 0.0, %v1296
    %v1313 = vsub.f32 0.0, %v1297
    %v1314 = vsub.f32 0.0, %v1298
    %v1315 = vsub.f32 0.0, %v1299
    %v1316 = vsub.f32 0.0, %v1300
    %v1317 = vsub.f32 0.0, %v1301
    %v1318 = vsub.f32 0.0, %v1302
    %v1319 = vsub.f32 0.0, %v1303
    %v1320 = vsub.f32 0.0, %v1304
    %v1321 = vsub.f32 0.0, %v1305
    %v1322 = vsub.f32 0.0, %v1306
    %v1323 = vsub.f32 0.0, %v1307
    %v1324 = vsub.f32 0.0, %v1308
    %v1325 = vsub.f32 0.0, %v1309
    %v1326 = vsub.f32 0.0, %v1310
    %v1327 = vmul.f32 %v1311, 1.442695
    %v1328 = vpow.pop %v1327
    %v1329 = vmul.f32 %v1312, 1.442695
    %v1330 = vpow.pop %v1329
    %v1331 = vmul.f32 %v1313, 1.442695
    %v1332 = vpow.pop %v1331
    %v1333 = vmul.f32 %v1314, 1.442695
    %v1334 = vpow.pop %v1333
    %v1335 = vmul.f32 %v1315, 1.442695
    %v1336 = vpow.pop %v1335
    %v1337 = vmul.f32 %v1316, 1.442695
    %v1338 = vpow.pop %v1337
    %v1339 = vmul.f32 %v1317, 1.442695
    %v1340 = vpow.pop %v1339
    %v1341 = vmul.f32 %v1318, 1.442695
    %v1342 = vpow.pop %v1341
    %v1343 = vmul.f32 %v1319, 1.442695
    %v1344 = vpow.pop %v1343
    %v1345 = vmul.f32 %v1320, 1.442695
    %v1346 = vpow.pop %v1345
    %v1347 = vmul.f32 %v1321, 1.442695
    %v1348 = vpow.pop %v1347
    %v1349 = vmul.f32 %v1322, 1.442695
    %v1350 = vpow.pop %v1349
    %v1351 = vmul.f32 %v1323, 1.442695
    %v1352 = vpow.pop %v1351
    %v1353 = vmul.f32 %v1324, 1.442695
    %v1354 = vpow.pop %v1353
    %v1355 = vmul.f32 %v1325, 1.442695
    %v1356 = vpow.pop %v1355
    %v1357 = vmul.f32 %v1326, 1.442695
    %v1358 = vpow.pop %v1357
    %v1359 = vadd.f32 %v1328, 1.0
    %v1360 = vlog2.pop %v1359
    %v1361 = vmul.f32 %v1360, 0.6931472
    %v1362 = vmul.f32 -0.5, %v1328
    %v1363 = vadd.f32 %v1362, 1.0
    %v1364 = vmul.f32 %v1363, %v1328
    %v1365 = vand.u32 2147483647, %v1328
    %vm1366 = vcmp.lt.f32.partialorder %v1365, 0.0004427343
    %v1367 = vsel %vm1366, %v1364, %v1361
    %v1368 = vadd.f32 %v1330, 1.0
    %v1369 = vlog2.pop %v1368
    %v1370 = vmul.f32 %v1369, 0.6931472
    %v1371 = vmul.f32 -0.5, %v1330
    %v1372 = vadd.f32 %v1371, 1.0
    %v1373 = vmul.f32 %v1372, %v1330
    %v1374 = vand.u32 2147483647, %v1330
    %vm1375 = vcmp.lt.f32.partialorder %v1374, 0.0004427343
    %v1376 = vsel %vm1375, %v1373, %v1370
    %v1377 = vadd.f32 %v1332, 1.0
    %v1378 = vlog2.pop %v1377
    %v1379 = vmul.f32 %v1378, 0.6931472
    %v1380 = vmul.f32 -0.5, %v1332
    %v1381 = vadd.f32 %v1380, 1.0
    %v1382 = vmul.f32 %v1381, %v1332
    %v1383 = vand.u32 2147483647, %v1332
    %vm1384 = vcmp.lt.f32.partialorder %v1383, 0.0004427343
    %v1385 = vsel %vm1384, %v1382, %v1379
    %v1386 = vadd.f32 %v1334, 1.0
    %v1387 = vlog2.pop %v1386
    %v1388 = vmul.f32 %v1387, 0.6931472
    %v1389 = vmul.f32 -0.5, %v1334
    %v1390 = vadd.f32 %v1389, 1.0
    %v1391 = vmul.f32 %v1390, %v1334
    %v1392 = vand.u32 2147483647, %v1334
    %vm1393 = vcmp.lt.f32.partialorder %v1392, 0.0004427343
    %v1394 = vsel %vm1393, %v1391, %v1388
    %v1395 = vadd.f32 %v1336, 1.0
    %v1396 = vlog2.pop %v1395
    %v1397 = vmul.f32 %v1396, 0.6931472
    %v1398 = vmul.f32 -0.5, %v1336
    %v1399 = vadd.f32 %v1398, 1.0
    %v1400 = vmul.f32 %v1399, %v1336
    %v1401 = vand.u32 2147483647, %v1336
    %vm1402 = vcmp.lt.f32.partialorder %v1401, 0.0004427343
    %v1403 = vsel %vm1402, %v1400, %v1397
    %v1404 = vadd.f32 %v1338, 1.0
    %v1405 = vlog2.pop %v1404
    %v1406 = vmul.f32 %v1405, 0.6931472
    %v1407 = vmul.f32 -0.5, %v1338
    %v1408 = vadd.f32 %v1407, 1.0
    %v1409 = vmul.f32 %v1408, %v1338
    %v1410 = vand.u32 2147483647, %v1338
    %vm1411 = vcmp.lt.f32.partialorder %v1410, 0.0004427343
    %v1412 = vsel %vm1411, %v1409, %v1406
    %v1413 = vadd.f32 %v1340, 1.0
    %v1414 = vlog2.pop %v1413
    %v1415 = vmul.f32 %v1414, 0.6931472
    %v1416 = vmul.f32 -0.5, %v1340
    %v1417 = vadd.f32 %v1416, 1.0
    %v1418 = vmul.f32 %v1417, %v1340
    %v1419 = vand.u32 2147483647, %v1340
    %vm1420 = vcmp.lt.f32.partialorder %v1419, 0.0004427343
    %v1421 = vsel %vm1420, %v1418, %v1415
    %v1422 = vadd.f32 %v1342, 1.0
    %v1423 = vlog2.pop %v1422
    %v1424 = vmul.f32 %v1423, 0.6931472
    %v1425 = vmul.f32 -0.5, %v1342
    %v1426 = vadd.f32 %v1425, 1.0
    %v1427 = vmul.f32 %v1426, %v1342
    %v1428 = vand.u32 2147483647, %v1342
    %vm1429 = vcmp.lt.f32.partialorder %v1428, 0.0004427343
    %v1430 = vsel %vm1429, %v1427, %v1424
    %v1431 = vadd.f32 %v1344, 1.0
    %v1432 = vlog2.pop %v1431
    %v1433 = vmul.f32 %v1432, 0.6931472
    %v1434 = vmul.f32 -0.5, %v1344
    %v1435 = vadd.f32 %v1434, 1.0
    %v1436 = vmul.f32 %v1435, %v1344
    %v1437 = vand.u32 2147483647, %v1344
    %vm1438 = vcmp.lt.f32.partialorder %v1437, 0.0004427343
    %v1439 = vsel %vm1438, %v1436, %v1433
    %v1440 = vadd.f32 %v1346, 1.0
    %v1441 = vlog2.pop %v1440
    %v1442 = vmul.f32 %v1441, 0.6931472
    %v1443 = vmul.f32 -0.5, %v1346
    %v1444 = vadd.f32 %v1443, 1.0
    %v1445 = vmul.f32 %v1444, %v1346
    %v1446 = vand.u32 2147483647, %v1346
    %vm1447 = vcmp.lt.f32.partialorder %v1446, 0.0004427343
    %v1448 = vsel %vm1447, %v1445, %v1442
    %v1449 = vadd.f32 %v1348, 1.0
    %v1450 = vlog2.pop %v1449
    %v1451 = vmul.f32 %v1450, 0.6931472
    %v1452 = vmul.f32 -0.5, %v1348
    %v1453 = vadd.f32 %v1452, 1.0
    %v1454 = vmul.f32 %v1453, %v1348
    %v1455 = vand.u32 2147483647, %v1348
    %vm1456 = vcmp.lt.f32.partialorder %v1455, 0.0004427343
    %v1457 = vsel %vm1456, %v1454, %v1451
    %v1458 = vadd.f32 %v1350, 1.0
    %v1459 = vlog2.pop %v1458
    %v1460 = vmul.f32 %v1459, 0.6931472
    %v1461 = vmul.f32 -0.5, %v1350
    %v1462 = vadd.f32 %v1461, 1.0
    %v1463 = vmul.f32 %v1462, %v1350
    %v1464 = vand.u32 2147483647, %v1350
    %vm1465 = vcmp.lt.f32.partialorder %v1464, 0.0004427343
    %v1466 = vsel %vm1465, %v1463, %v1460
    %v1467 = vadd.f32 %v1352, 1.0
    %v1468 = vlog2.pop %v1467
    %v1469 = vmul.f32 %v1468, 0.6931472
    %v1470 = vmul.f32 -0.5, %v1352
    %v1471 = vadd.f32 %v1470, 1.0
    %v1472 = vmul.f32 %v1471, %v1352
    %v1473 = vand.u32 2147483647, %v1352
    %vm1474 = vcmp.lt.f32.partialorder %v1473, 0.0004427343
    %v1475 = vsel %vm1474, %v1472, %v1469
    %v1476 = vadd.f32 %v1354, 1.0
    %v1477 = vlog2.pop %v1476
    %v1478 = vmul.f32 %v1477, 0.6931472
    %v1479 = vmul.f32 -0.5, %v1354
    %v1480 = vadd.f32 %v1479, 1.0
    %v1481 = vmul.f32 %v1480, %v1354
    %v1482 = vand.u32 2147483647, %v1354
    %vm1483 = vcmp.lt.f32.partialorder %v1482, 0.0004427343
    %v1484 = vsel %vm1483, %v1481, %v1478
    %v1485 = vadd.f32 %v1356, 1.0
    %v1486 = vlog2.pop %v1485
    %v1487 = vmul.f32 %v1486, 0.6931472
    %v1488 = vmul.f32 -0.5, %v1356
    %v1489 = vadd.f32 %v1488, 1.0
    %v1490 = vmul.f32 %v1489, %v1356
    %v1491 = vand.u32 2147483647, %v1356
    %vm1492 = vcmp.lt.f32.partialorder %v1491, 0.0004427343
    %v1493 = vsel %vm1492, %v1490, %v1487
    %v1494 = vadd.f32 %v1358, 1.0
    %v1495 = vlog2.pop %v1494
    %v1496 = vmul.f32 %v1495, 0.6931472
    %v1497 = vmul.f32 -0.5, %v1358
    %v1498 = vadd.f32 %v1497, 1.0
    %v1499 = vmul.f32 %v1498, %v1358
    %v1500 = vand.u32 2147483647, %v1358
    %vm1501 = vcmp.lt.f32.partialorder %v1500, 0.0004427343
    %v1502 = vsel %vm1501, %v1499, %v1496
    %v1503 = vadd.f32 %v1279, %v1367
    %v1504 = vadd.f32 %v1280, %v1376
    %v1505 = vadd.f32 %v1281, %v1385
    %v1506 = vadd.f32 %v1282, %v1394
    %v1507 = vadd.f32 %v1283, %v1403
    %v1508 = vadd.f32 %v1284, %v1412
    %v1509 = vadd.f32 %v1285, %v1421
    %v1510 = vadd.f32 %v1286, %v1430
    %v1511 = vadd.f32 %v1287, %v1439
    %v1512 = vadd.f32 %v1288, %v1448
    %v1513 = vadd.f32 %v1289, %v1457
    %v1514 = vadd.f32 %v1290, %v1466
    %v1515 = vadd.f32 %v1291, %v1475
    %v1516 = vadd.f32 %v1292, %v1484
    %v1517 = vadd.f32 %v1293, %v1493
    %v1518 = vadd.f32 %v1294, %v1502
    %v1519 = vld [vmem:[%s4] sm:$0xf]
    %1521 = vset.pattern.permute.xlu0 0
    %1522 = vperm.xlu0 %1521, %v1519
    %v1523 = vpop.permute.xlu0 %1522
    %1525 = vmatprep.subr.mxu0 0.0
    %v1526 = vand.u32 %v1503, 4294901760
    %1527 = vmatpush1.msra.mxu0 %v1526
    %1528 = vmatprep.subr.mxu0 0.0
    %v1529 = vand.u32 %v1504, 4294901760
    %1530 = vmatpush1.msra.mxu0 %v1529
    %1531 = vmatprep.subr.mxu0 0.0
    %v1532 = vand.u32 %v1505, 4294901760
    %1533 = vmatpush1.msra.mxu0 %v1532
    %1534 = vmatprep.subr.mxu0 0.0
    %v1535 = vand.u32 %v1506, 4294901760
    %1536 = vmatpush1.msra.mxu0 %v1535
    %1537 = vmatprep.subr.mxu0 0.0
    %v1538 = vand.u32 %v1507, 4294901760
    %1539 = vmatpush1.msra.mxu0 %v1538
    %1540 = vmatprep.subr.mxu0 0.0
    %v1541 = vand.u32 %v1508, 4294901760
    %1542 = vmatpush1.msra.mxu0 %v1541
    %1543 = vmatprep.subr.mxu0 0.0
    %v1544 = vand.u32 %v1509, 4294901760
    %1545 = vmatpush1.msra.mxu0 %v1544
    %1546 = vmatprep.subr.mxu0 0.0
    %v1547 = vand.u32 %v1510, 4294901760
    %1548 = vmatpush1.msra.mxu0 %v1547
    %1549 = vmatprep.subr.mxu0 0.0
    %v1550 = vand.u32 %v1511, 4294901760
    %1551 = vmatpush1.msra.mxu0 %v1550
    %1552 = vmatprep.subr.mxu0 0.0
    %v1553 = vand.u32 %v1512, 4294901760
    %1554 = vmatpush1.msra.mxu0 %v1553
    %1555 = vmatprep.subr.mxu0 0.0
    %v1556 = vand.u32 %v1513, 4294901760
    %1557 = vmatpush1.msra.mxu0 %v1556
    %1558 = vmatprep.subr.mxu0 0.0
    %v1559 = vand.u32 %v1514, 4294901760
    %1560 = vmatpush1.msra.mxu0 %v1559
    %1561 = vmatprep.subr.mxu0 0.0
    %v1562 = vand.u32 %v1515, 4294901760
    %1563 = vmatpush1.msra.mxu0 %v1562
    %1564 = vmatprep.subr.mxu0 0.0
    %v1565 = vand.u32 %v1516, 4294901760
    %1566 = vmatpush1.msra.mxu0 %v1565
    %1567 = vmatprep.subr.mxu0 0.0
    %v1568 = vand.u32 %v1517, 4294901760
    %1569 = vmatpush1.msra.mxu0 %v1568
    %1570 = vmatprep.subr.mxu0 0.0
    %v1571 = vand.u32 %v1518, 4294901760
    %1572 = vmatpush1.msra.mxu0 %v1571
    %1573 = vmatprep.subr.mxu0 0.0
    %1574 = vmatpush1.msra.mxu0 0.0
    %1575 = vmatprep.subr.mxu0 0.0
    %1576 = vmatpush1.msra.mxu0 0.0
    %1577 = vmatprep.subr.mxu0 0.0
    %1578 = vmatpush1.msra.mxu0 0.0
    %1579 = vmatprep.subr.mxu0 0.0
    %1580 = vmatpush1.msra.mxu0 0.0
    %1581 = vmatprep.subr.mxu0 0.0
    %1582 = vmatpush1.msra.mxu0 0.0
    %1583 = vmatprep.subr.mxu0 0.0
    %1584 = vmatpush1.msra.mxu0 0.0
    %1585 = vmatprep.subr.mxu0 0.0
    %1586 = vmatpush1.msra.mxu0 0.0
    %1587 = vmatprep.subr.mxu0 0.0
    %1588 = vmatpush1.msra.mxu0 0.0
    %1589 = vmatprep.subr.mxu0 0.0
    %1590 = vmatpush1.msra.mxu0 0.0
    %1591 = vmatprep.subr.mxu0 0.0
    %1592 = vmatpush1.msra.mxu0 0.0
    %1593 = vmatprep.subr.mxu0 0.0
    %1594 = vmatpush1.msra.mxu0 0.0
    %1595 = vmatprep.subr.mxu0 0.0
    %1596 = vmatpush1.msra.mxu0 0.0
    %1597 = vmatprep.subr.mxu0 0.0
    %1598 = vmatpush1.msra.mxu0 0.0
    %1599 = vmatprep.subr.mxu0 0.0
    %1600 = vmatpush1.msra.mxu0 0.0
    %1601 = vmatprep.subr.mxu0 0.0
    %1602 = vmatpush1.msra.mxu0 0.0
    %1603 = vmatprep.subr.mxu0 0.0
    %1604 = vmatpush1.msra.mxu0 0.0
    %1605 = vmatprep.mubr.f32.mxu0 0.0
    %v1606 = vand.u32 %v38, 4294901760
    %v1607 = vsub.f32 %v38, %v1606
    %v1608 = vand.u32 %v1607, 4294901760
    %v1609 = vsub.f32 %v1607, %v1608
    %v1610 = vand.u32 %v1609, 4294901760
    %1611 = vmatmul.mubr.f32.gmra.mrb[0].mxu0 %v1610
    %v1612 = vpop.f32.mrb[0].mxu0
    %v1613 = vadd.f32 %v1523, %v1612
    %v1614 = vpop.f32.mrb[0].mxu0
    %1615 = vdwg.mxu0
    %1616 = vmatprep.subr.mxu0 0.0
    %v1617 = vand.u32 %v1503, 4294901760
    %v1618 = vsub.f32 %v1503, %v1617
    %v1619 = vand.u32 %v1618, 4294901760
    %v1620 = vsub.f32 %v1618, %v1619
    %v1621 = vand.u32 %v1620, 4294901760
    %1622 = vmatpush1.msra.mxu0 %v1621
    %1623 = vmatprep.subr.mxu0 0.0
    %v1624 = vand.u32 %v1504, 4294901760
    %v1625 = vsub.f32 %v1504, %v1624
    %v1626 = vand.u32 %v1625, 4294901760
    %v1627 = vsub.f32 %v1625, %v1626
    %v1628 = vand.u32 %v1627, 4294901760
    %1629 = vmatpush1.msra.mxu0 %v1628
    %1630 = vmatprep.subr.mxu0 0.0
    %v1631 = vand.u32 %v1505, 4294901760
    %v1632 = vsub.f32 %v1505, %v1631
    %v1633 = vand.u32 %v1632, 4294901760
    %v1634 = vsub.f32 %v1632, %v1633
    %v1635 = vand.u32 %v1634, 4294901760
    %1636 = vmatpush1.msra.mxu0 %v1635
    %1637 = vmatprep.subr.mxu0 0.0
    %v1638 = vand.u32 %v1506, 4294901760
    %v1639 = vsub.f32 %v1506, %v1638
    %v1640 = vand.u32 %v1639, 4294901760
    %v1641 = vsub.f32 %v1639, %v1640
    %v1642 = vand.u32 %v1641, 4294901760
    %1643 = vmatpush1.msra.mxu0 %v1642
    %1644 = vmatprep.subr.mxu0 0.0
    %v1645 = vand.u32 %v1507, 4294901760
    %v1646 = vsub.f32 %v1507, %v1645
    %v1647 = vand.u32 %v1646, 4294901760
    %v1648 = vsub.f32 %v1646, %v1647
    %v1649 = vand.u32 %v1648, 4294901760
    %1650 = vmatpush1.msra.mxu0 %v1649
    %1651 = vmatprep.subr.mxu0 0.0
    %v1652 = vand.u32 %v1508, 4294901760
    %v1653 = vsub.f32 %v1508, %v1652
    %v1654 = vand.u32 %v1653, 4294901760
    %v1655 = vsub.f32 %v1653, %v1654
    %v1656 = vand.u32 %v1655, 4294901760
    %1657 = vmatpush1.msra.mxu0 %v1656
    %1658 = vmatprep.subr.mxu0 0.0
    %v1659 = vand.u32 %v1509, 4294901760
    %v1660 = vsub.f32 %v1509, %v1659
    %v1661 = vand.u32 %v1660, 4294901760
    %v1662 = vsub.f32 %v1660, %v1661
    %v1663 = vand.u32 %v1662, 4294901760
    %1664 = vmatpush1.msra.mxu0 %v1663
    %1665 = vmatprep.subr.mxu0 0.0
    %v1666 = vand.u32 %v1510, 4294901760
    %v1667 = vsub.f32 %v1510, %v1666
    %v1668 = vand.u32 %v1667, 4294901760
    %v1669 = vsub.f32 %v1667, %v1668
    %v1670 = vand.u32 %v1669, 4294901760
    %1671 = vmatpush1.msra.mxu0 %v1670
    %1672 = vmatprep.subr.mxu0 0.0
    %v1673 = vand.u32 %v1511, 4294901760
    %v1674 = vsub.f32 %v1511, %v1673
    %v1675 = vand.u32 %v1674, 4294901760
    %v1676 = vsub.f32 %v1674, %v1675
    %v1677 = vand.u32 %v1676, 4294901760
    %1678 = vmatpush1.msra.mxu0 %v1677
    %1679 = vmatprep.subr.mxu0 0.0
    %v1680 = vand.u32 %v1512, 4294901760
    %v1681 = vsub.f32 %v1512, %v1680
    %v1682 = vand.u32 %v1681, 4294901760
    %v1683 = vsub.f32 %v1681, %v1682
    %v1684 = vand.u32 %v1683, 4294901760
    %1685 = vmatpush1.msra.mxu0 %v1684
    %1686 = vmatprep.subr.mxu0 0.0
    %v1687 = vand.u32 %v1513, 4294901760
    %v1688 = vsub.f32 %v1513, %v1687
    %v1689 = vand.u32 %v1688, 4294901760
    %v1690 = vsub.f32 %v1688, %v1689
    %v1691 = vand.u32 %v1690, 4294901760
    %1692 = vmatpush1.msra.mxu0 %v1691
    %1693 = vmatprep.subr.mxu0 0.0
    %v1694 = vand.u32 %v1514, 4294901760
    %v1695 = vsub.f32 %v1514, %v1694
    %v1696 = vand.u32 %v1695, 4294901760
    %v1697 = vsub.f32 %v1695, %v1696
    %v1698 = vand.u32 %v1697, 4294901760
    %1699 = vmatpush1.msra.mxu0 %v1698
    %1700 = vmatprep.subr.mxu0 0.0
    %v1701 = vand.u32 %v1515, 4294901760
    %v1702 = vsub.f32 %v1515, %v1701
    %v1703 = vand.u32 %v1702, 4294901760
    %v1704 = vsub.f32 %v1702, %v1703
    %v1705 = vand.u32 %v1704, 4294901760
    %1706 = vmatpush1.msra.mxu0 %v1705
    %1707 = vmatprep.subr.mxu0 0.0
    %v1708 = vand.u32 %v1516, 4294901760
    %v1709 = vsub.f32 %v1516, %v1708
    %v1710 = vand.u32 %v1709, 4294901760
    %v1711 = vsub.f32 %v1709, %v1710
    %v1712 = vand.u32 %v1711, 4294901760
    %1713 = vmatpush1.msra.mxu0 %v1712
    %1714 = vmatprep.subr.mxu0 0.0
    %v1715 = vand.u32 %v1517, 4294901760
    %v1716 = vsub.f32 %v1517, %v1715
    %v1717 = vand.u32 %v1716, 4294901760
    %v1718 = vsub.f32 %v1716, %v1717
    %v1719 = vand.u32 %v1718, 4294901760
    %1720 = vmatpush1.msra.mxu0 %v1719
    %1721 = vmatprep.subr.mxu0 0.0
    %v1722 = vand.u32 %v1518, 4294901760
    %v1723 = vsub.f32 %v1518, %v1722
    %v1724 = vand.u32 %v1723, 4294901760
    %v1725 = vsub.f32 %v1723, %v1724
    %v1726 = vand.u32 %v1725, 4294901760
    %1727 = vmatpush1.msra.mxu0 %v1726
    %1728 = vmatprep.subr.mxu0 0.0
    %1729 = vmatpush1.msra.mxu0 0.0
    %1730 = vmatprep.subr.mxu0 0.0
    %1731 = vmatpush1.msra.mxu0 0.0
    %1732 = vmatprep.subr.mxu0 0.0
    %1733 = vmatpush1.msra.mxu0 0.0
    %1734 = vmatprep.subr.mxu0 0.0
    %1735 = vmatpush1.msra.mxu0 0.0
    %1736 = vmatprep.subr.mxu0 0.0
    %1737 = vmatpush1.msra.mxu0 0.0
    %1738 = vmatprep.subr.mxu0 0.0
    %1739 = vmatpush1.msra.mxu0 0.0
    %1740 = vmatprep.subr.mxu0 0.0
    %1741 = vmatpush1.msra.mxu0 0.0
    %1742 = vmatprep.subr.mxu0 0.0
    %1743 = vmatpush1.msra.mxu0 0.0
    %1744 = vmatprep.subr.mxu0 0.0
    %1745 = vmatpush1.msra.mxu0 0.0
    %1746 = vmatprep.subr.mxu0 0.0
    %1747 = vmatpush1.msra.mxu0 0.0
    %1748 = vmatprep.subr.mxu0 0.0
    %1749 = vmatpush1.msra.mxu0 0.0
    %1750 = vmatprep.subr.mxu0 0.0
    %1751 = vmatpush1.msra.mxu0 0.0
    %1752 = vmatprep.subr.mxu0 0.0
    %1753 = vmatpush1.msra.mxu0 0.0
    %1754 = vmatprep.subr.mxu0 0.0
    %1755 = vmatpush1.msra.mxu0 0.0
    %1756 = vmatprep.subr.mxu0 0.0
    %1757 = vmatpush1.msra.mxu0 0.0
    %1758 = vmatprep.subr.mxu0 0.0
    %1759 = vmatpush1.msra.mxu0 0.0
    %1760 = vmatprep.mubr.f32.mxu0 0.0
    %v1761 = vand.u32 %v38, 4294901760
    %1762 = vmatmul.mubr.f32.gmra.mrb[0].mxu0 %v1761
    %v1763 = vpop.f32.mrb[0].mxu0
    %v1764 = vadd.f32 %v1613, %v1763
    %v1765 = vpop.f32.mrb[0].mxu0
    %1766 = vdwg.mxu0
    %1767 = vmatprep.subr.mxu0 0.0
    %v1768 = vand.u32 %v1503, 4294901760
    %v1769 = vsub.f32 %v1503, %v1768
    %1770 = vmatpush1.msra.mxu0 %v1769
    %1771 = vmatprep.subr.mxu0 0.0
    %v1772 = vand.u32 %v1504, 4294901760
    %v1773 = vsub.f32 %v1504, %v1772
    %1774 = vmatpush1.msra.mxu0 %v1773
    %1775 = vmatprep.subr.mxu0 0.0
    %v1776 = vand.u32 %v1505, 4294901760
    %v1777 = vsub.f32 %v1505, %v1776
    %1778 = vmatpush1.msra.mxu0 %v1777
    %1779 = vmatprep.subr.mxu0 0.0
    %v1780 = vand.u32 %v1506, 4294901760
    %v1781 = vsub.f32 %v1506, %v1780
    %1782 = vmatpush1.msra.mxu0 %v1781
    %1783 = vmatprep.subr.mxu0 0.0
    %v1784 = vand.u32 %v1507, 4294901760
    %v1785 = vsub.f32 %v1507, %v1784
    %1786 = vmatpush1.msra.mxu0 %v1785
    %1787 = vmatprep.subr.mxu0 0.0
    %v1788 = vand.u32 %v1508, 4294901760
    %v1789 = vsub.f32 %v1508, %v1788
    %1790 = vmatpush1.msra.mxu0 %v1789
    %1791 = vmatprep.subr.mxu0 0.0
    %v1792 = vand.u32 %v1509, 4294901760
    %v1793 = vsub.f32 %v1509, %v1792
    %1794 = vmatpush1.msra.mxu0 %v1793
    %1795 = vmatprep.subr.mxu0 0.0
    %v1796 = vand.u32 %v1510, 4294901760
    %v1797 = vsub.f32 %v1510, %v1796
    %1798 = vmatpush1.msra.mxu0 %v1797
    %1799 = vmatprep.subr.mxu0 0.0
    %v1800 = vand.u32 %v1511, 4294901760
    %v1801 = vsub.f32 %v1511, %v1800
    %1802 = vmatpush1.msra.mxu0 %v1801
    %1803 = vmatprep.subr.mxu0 0.0
    %v1804 = vand.u32 %v1512, 4294901760
    %v1805 = vsub.f32 %v1512, %v1804
    %1806 = vmatpush1.msra.mxu0 %v1805
    %1807 = vmatprep.subr.mxu0 0.0
    %v1808 = vand.u32 %v1513, 4294901760
    %v1809 = vsub.f32 %v1513, %v1808
    %1810 = vmatpush1.msra.mxu0 %v1809
    %1811 = vmatprep.subr.mxu0 0.0
    %v1812 = vand.u32 %v1514, 4294901760
    %v1813 = vsub.f32 %v1514, %v1812
    %1814 = vmatpush1.msra.mxu0 %v1813
    %1815 = vmatprep.subr.mxu0 0.0
    %v1816 = vand.u32 %v1515, 4294901760
    %v1817 = vsub.f32 %v1515, %v1816
    %1818 = vmatpush1.msra.mxu0 %v1817
    %1819 = vmatprep.subr.mxu0 0.0
    %v1820 = vand.u32 %v1516, 4294901760
    %v1821 = vsub.f32 %v1516, %v1820
    %1822 = vmatpush1.msra.mxu0 %v1821
    %1823 = vmatprep.subr.mxu0 0.0
    %v1824 = vand.u32 %v1517, 4294901760
    %v1825 = vsub.f32 %v1517, %v1824
    %1826 = vmatpush1.msra.mxu0 %v1825
    %1827 = vmatprep.subr.mxu0 0.0
    %v1828 = vand.u32 %v1518, 4294901760
    %v1829 = vsub.f32 %v1518, %v1828
    %1830 = vmatpush1.msra.mxu0 %v1829
    %1831 = vmatprep.subr.mxu0 0.0
    %1832 = vmatpush1.msra.mxu0 0.0
    %1833 = vmatprep.subr.mxu0 0.0
    %1834 = vmatpush1.msra.mxu0 0.0
    %1835 = vmatprep.subr.mxu0 0.0
    %1836 = vmatpush1.msra.mxu0 0.0
    %1837 = vmatprep.subr.mxu0 0.0
    %1838 = vmatpush1.msra.mxu0 0.0
    %1839 = vmatprep.subr.mxu0 0.0
    %1840 = vmatpush1.msra.mxu0 0.0
    %1841 = vmatprep.subr.mxu0 0.0
    %1842 = vmatpush1.msra.mxu0 0.0
    %1843 = vmatprep.subr.mxu0 0.0
    %1844 = vmatpush1.msra.mxu0 0.0
    %1845 = vmatprep.subr.mxu0 0.0
    %1846 = vmatpush1.msra.mxu0 0.0
    %1847 = vmatprep.subr.mxu0 0.0
    %1848 = vmatpush1.msra.mxu0 0.0
    %1849 = vmatprep.subr.mxu0 0.0
    %1850 = vmatpush1.msra.mxu0 0.0
    %1851 = vmatprep.subr.mxu0 0.0
    %1852 = vmatpush1.msra.mxu0 0.0
    %1853 = vmatprep.subr.mxu0 0.0
    %1854 = vmatpush1.msra.mxu0 0.0
    %1855 = vmatprep.subr.mxu0 0.0
    %1856 = vmatpush1.msra.mxu0 0.0
    %1857 = vmatprep.subr.mxu0 0.0
    %1858 = vmatpush1.msra.mxu0 0.0
    %1859 = vmatprep.subr.mxu0 0.0
    %1860 = vmatpush1.msra.mxu0 0.0
    %1861 = vmatprep.subr.mxu0 0.0
    %1862 = vmatpush1.msra.mxu0 0.0
    %1863 = vmatprep.mubr.f32.mxu0 0.0
    %v1864 = vand.u32 %v38, 4294901760
    %v1865 = vsub.f32 %v38, %v1864
    %1866 = vmatmul.mubr.f32.gmra.mrb[0].mxu0 %v1865
    %v1867 = vpop.f32.mrb[0].mxu0
    %v1868 = vadd.f32 %v1764, %v1867
    %v1869 = vpop.f32.mrb[0].mxu0
    %1870 = vdwg.mxu0
    %1871 = vmatprep.subr.mxu0 0.0
    %v1872 = vand.u32 %v1503, 4294901760
    %1873 = vmatpush1.msra.mxu0 %v1872
    %1874 = vmatprep.subr.mxu0 0.0
    %v1875 = vand.u32 %v1504, 4294901760
    %1876 = vmatpush1.msra.mxu0 %v1875
    %1877 = vmatprep.subr.mxu0 0.0
    %v1878 = vand.u32 %v1505, 4294901760
    %1879 = vmatpush1.msra.mxu0 %v1878
    %1880 = vmatprep.subr.mxu0 0.0
    %v1881 = vand.u32 %v1506, 4294901760
    %1882 = vmatpush1.msra.mxu0 %v1881
    %1883 = vmatprep.subr.mxu0 0.0
    %v1884 = vand.u32 %v1507, 4294901760
    %1885 = vmatpush1.msra.mxu0 %v1884
    %1886 = vmatprep.subr.mxu0 0.0
    %v1887 = vand.u32 %v1508, 4294901760
    %1888 = vmatpush1.msra.mxu0 %v1887
    %1889 = vmatprep.subr.mxu0 0.0
    %v1890 = vand.u32 %v1509, 4294901760
    %1891 = vmatpush1.msra.mxu0 %v1890
    %1892 = vmatprep.subr.mxu0 0.0
    %v1893 = vand.u32 %v1510, 4294901760
    %1894 = vmatpush1.msra.mxu0 %v1893
    %1895 = vmatprep.subr.mxu0 0.0
    %v1896 = vand.u32 %v1511, 4294901760
    %1897 = vmatpush1.msra.mxu0 %v1896
    %1898 = vmatprep.subr.mxu0 0.0
    %v1899 = vand.u32 %v1512, 4294901760
    %1900 = vmatpush1.msra.mxu0 %v1899
    %1901 = vmatprep.subr.mxu0 0.0
    %v1902 = vand.u32 %v1513, 4294901760
    %1903 = vmatpush1.msra.mxu0 %v1902
    %1904 = vmatprep.subr.mxu0 0.0
    %v1905 = vand.u32 %v1514, 4294901760
    %1906 = vmatpush1.msra.mxu0 %v1905
    %1907 = vmatprep.subr.mxu0 0.0
    %v1908 = vand.u32 %v1515, 4294901760
    %1909 = vmatpush1.msra.mxu0 %v1908
    %1910 = vmatprep.subr.mxu0 0.0
    %v1911 = vand.u32 %v1516, 4294901760
    %1912 = vmatpush1.msra.mxu0 %v1911
    %1913 = vmatprep.subr.mxu0 0.0
    %v1914 = vand.u32 %v1517, 4294901760
    %1915 = vmatpush1.msra.mxu0 %v1914
    %1916 = vmatprep.subr.mxu0 0.0
    %v1917 = vand.u32 %v1518, 4294901760
    %1918 = vmatpush1.msra.mxu0 %v1917
    %1919 = vmatprep.subr.mxu0 0.0
    %1920 = vmatpush1.msra.mxu0 0.0
    %1921 = vmatprep.subr.mxu0 0.0
    %1922 = vmatpush1.msra.mxu0 0.0
    %1923 = vmatprep.subr.mxu0 0.0
    %1924 = vmatpush1.msra.mxu0 0.0
    %1925 = vmatprep.subr.mxu0 0.0
    %1926 = vmatpush1.msra.mxu0 0.0
    %1927 = vmatprep.subr.mxu0 0.0
    %1928 = vmatpush1.msra.mxu0 0.0
    %1929 = vmatprep.subr.mxu0 0.0
    %1930 = vmatpush1.msra.mxu0 0.0
    %1931 = vmatprep.subr.mxu0 0.0
    %1932 = vmatpush1.msra.mxu0 0.0
    %1933 = vmatprep.subr.mxu0 0.0
    %1934 = vmatpush1.msra.mxu0 0.0
    %1935 = vmatprep.subr.mxu0 0.0
    %1936 = vmatpush1.msra.mxu0 0.0
    %1937 = vmatprep.subr.mxu0 0.0
    %1938 = vmatpush1.msra.mxu0 0.0
    %1939 = vmatprep.subr.mxu0 0.0
    %1940 = vmatpush1.msra.mxu0 0.0
    %1941 = vmatprep.subr.mxu0 0.0
    %1942 = vmatpush1.msra.mxu0 0.0
    %1943 = vmatprep.subr.mxu0 0.0
    %1944 = vmatpush1.msra.mxu0 0.0
    %1945 = vmatprep.subr.mxu0 0.0
    %1946 = vmatpush1.msra.mxu0 0.0
    %1947 = vmatprep.subr.mxu0 0.0
    %1948 = vmatpush1.msra.mxu0 0.0
    %1949 = vmatprep.subr.mxu0 0.0
    %1950 = vmatpush1.msra.mxu0 0.0
    %1951 = vmatprep.mubr.f32.mxu0 0.0
    %v1952 = vand.u32 %v38, 4294901760
    %v1953 = vsub.f32 %v38, %v1952
    %v1954 = vand.u32 %v1953, 4294901760
    %1955 = vmatmul.mubr.f32.gmra.mrb[0].mxu0 %v1954
    %v1956 = vpop.f32.mrb[0].mxu0
    %v1957 = vadd.f32 %v1868, %v1956
    %v1958 = vpop.f32.mrb[0].mxu0
    %1959 = vdwg.mxu0
    %1960 = vmatprep.subr.mxu0 0.0
    %v1961 = vand.u32 %v1503, 4294901760
    %v1962 = vsub.f32 %v1503, %v1961
    %v1963 = vand.u32 %v1962, 4294901760
    %1964 = vmatpush1.msra.mxu0 %v1963
    %1965 = vmatprep.subr.mxu0 0.0
    %v1966 = vand.u32 %v1504, 4294901760
    %v1967 = vsub.f32 %v1504, %v1966
    %v1968 = vand.u32 %v1967, 4294901760
    %1969 = vmatpush1.msra.mxu0 %v1968
    %1970 = vmatprep.subr.mxu0 0.0
    %v1971 = vand.u32 %v1505, 4294901760
    %v1972 = vsub.f32 %v1505, %v1971
    %v1973 = vand.u32 %v1972, 4294901760
    %1974 = vmatpush1.msra.mxu0 %v1973
    %1975 = vmatprep.subr.mxu0 0.0
    %v1976 = vand.u32 %v1506, 4294901760
    %v1977 = vsub.f32 %v1506, %v1976
    %v1978 = vand.u32 %v1977, 4294901760
    %1979 = vmatpush1.msra.mxu0 %v1978
    %1980 = vmatprep.subr.mxu0 0.0
    %v1981 = vand.u32 %v1507, 4294901760
    %v1982 = vsub.f32 %v1507, %v1981
    %v1983 = vand.u32 %v1982, 4294901760
    %1984 = vmatpush1.msra.mxu0 %v1983
    %1985 = vmatprep.subr.mxu0 0.0
    %v1986 = vand.u32 %v1508, 4294901760
    %v1987 = vsub.f32 %v1508, %v1986
    %v1988 = vand.u32 %v1987, 4294901760
    %1989 = vmatpush1.msra.mxu0 %v1988
    %1990 = vmatprep.subr.mxu0 0.0
    %v1991 = vand.u32 %v1509, 4294901760
    %v1992 = vsub.f32 %v1509, %v1991
    %v1993 = vand.u32 %v1992, 4294901760
    %1994 = vmatpush1.msra.mxu0 %v1993
    %1995 = vmatprep.subr.mxu0 0.0
    %v1996 = vand.u32 %v1510, 4294901760
    %v1997 = vsub.f32 %v1510, %v1996
    %v1998 = vand.u32 %v1997, 4294901760
    %1999 = vmatpush1.msra.mxu0 %v1998
    %2000 = vmatprep.subr.mxu0 0.0
    %v2001 = vand.u32 %v1511, 4294901760
    %v2002 = vsub.f32 %v1511, %v2001
    %v2003 = vand.u32 %v2002, 4294901760
    %2004 = vmatpush1.msra.mxu0 %v2003
    %2005 = vmatprep.subr.mxu0 0.0
    %v2006 = vand.u32 %v1512, 4294901760
    %v2007 = vsub.f32 %v1512, %v2006
    %v2008 = vand.u32 %v2007, 4294901760
    %2009 = vmatpush1.msra.mxu0 %v2008
    %2010 = vmatprep.subr.mxu0 0.0
    %v2011 = vand.u32 %v1513, 4294901760
    %v2012 = vsub.f32 %v1513, %v2011
    %v2013 = vand.u32 %v2012, 4294901760
    %2014 = vmatpush1.msra.mxu0 %v2013
    %2015 = vmatprep.subr.mxu0 0.0
    %v2016 = vand.u32 %v1514, 4294901760
    %v2017 = vsub.f32 %v1514, %v2016
    %v2018 = vand.u32 %v2017, 4294901760
    %2019 = vmatpush1.msra.mxu0 %v2018
    %2020 = vmatprep.subr.mxu0 0.0
    %v2021 = vand.u32 %v1515, 4294901760
    %v2022 = vsub.f32 %v1515, %v2021
    %v2023 = vand.u32 %v2022, 4294901760
    %2024 = vmatpush1.msra.mxu0 %v2023
    %2025 = vmatprep.subr.mxu0 0.0
    %v2026 = vand.u32 %v1516, 4294901760
    %v2027 = vsub.f32 %v1516, %v2026
    %v2028 = vand.u32 %v2027, 4294901760
    %2029 = vmatpush1.msra.mxu0 %v2028
    %2030 = vmatprep.subr.mxu0 0.0
    %v2031 = vand.u32 %v1517, 4294901760
    %v2032 = vsub.f32 %v1517, %v2031
    %v2033 = vand.u32 %v2032, 4294901760
    %2034 = vmatpush1.msra.mxu0 %v2033
    %2035 = vmatprep.subr.mxu0 0.0
    %v2036 = vand.u32 %v1518, 4294901760
    %v2037 = vsub.f32 %v1518, %v2036
    %v2038 = vand.u32 %v2037, 4294901760
    %2039 = vmatpush1.msra.mxu0 %v2038
    %2040 = vmatprep.subr.mxu0 0.0
    %2041 = vmatpush1.msra.mxu0 0.0
    %2042 = vmatprep.subr.mxu0 0.0
    %2043 = vmatpush1.msra.mxu0 0.0
    %2044 = vmatprep.subr.mxu0 0.0
    %2045 = vmatpush1.msra.mxu0 0.0
    %2046 = vmatprep.subr.mxu0 0.0
    %2047 = vmatpush1.msra.mxu0 0.0
    %2048 = vmatprep.subr.mxu0 0.0
    %2049 = vmatpush1.msra.mxu0 0.0
    %2050 = vmatprep.subr.mxu0 0.0
    %2051 = vmatpush1.msra.mxu0 0.0
    %2052 = vmatprep.subr.mxu0 0.0
    %2053 = vmatpush1.msra.mxu0 0.0
    %2054 = vmatprep.subr.mxu0 0.0
    %2055 = vmatpush1.msra.mxu0 0.0
    %2056 = vmatprep.subr.mxu0 0.0
    %2057 = vmatpush1.msra.mxu0 0.0
    %2058 = vmatprep.subr.mxu0 0.0
    %2059 = vmatpush1.msra.mxu0 0.0
    %2060 = vmatprep.subr.mxu0 0.0
    %2061 = vmatpush1.msra.mxu0 0.0
    %2062 = vmatprep.subr.mxu0 0.0
    %2063 = vmatpush1.msra.mxu0 0.0
    %2064 = vmatprep.subr.mxu0 0.0
    %2065 = vmatpush1.msra.mxu0 0.0
    %2066 = vmatprep.subr.mxu0 0.0
    %2067 = vmatpush1.msra.mxu0 0.0
    %2068 = vmatprep.subr.mxu0 0.0
    %2069 = vmatpush1.msra.mxu0 0.0
    %2070 = vmatprep.subr.mxu0 0.0
    %2071 = vmatpush1.msra.mxu0 0.0
    %2072 = vmatprep.mubr.f32.mxu0 0.0
    %v2073 = vand.u32 %v38, 4294901760
    %2074 = vmatmul.mubr.f32.gmra.mrb[0].mxu0 %v2073
    %v2075 = vpop.f32.mrb[0].mxu0
    %v2076 = vadd.f32 %v1957, %v2075
    %v2077 = vpop.f32.mrb[0].mxu0
    %2078 = vdwg.mxu0
    %2079 = vmatprep.subr.mxu0 0.0
    %v2080 = vand.u32 %v1503, 4294901760
    %2081 = vmatpush1.msra.mxu0 %v2080
    %2082 = vmatprep.subr.mxu0 0.0
    %v2083 = vand.u32 %v1504, 4294901760
    %2084 = vmatpush1.msra.mxu0 %v2083
    %2085 = vmatprep.subr.mxu0 0.0
    %v2086 = vand.u32 %v1505, 4294901760
    %2087 = vmatpush1.msra.mxu0 %v2086
    %2088 = vmatprep.subr.mxu0 0.0
    %v2089 = vand.u32 %v1506, 4294901760
    %2090 = vmatpush1.msra.mxu0 %v2089
    %2091 = vmatprep.subr.mxu0 0.0
    %v2092 = vand.u32 %v1507, 4294901760
    %2093 = vmatpush1.msra.mxu0 %v2092
    %2094 = vmatprep.subr.mxu0 0.0
    %v2095 = vand.u32 %v1508, 4294901760
    %2096 = vmatpush1.msra.mxu0 %v2095
    %2097 = vmatprep.subr.mxu0 0.0
    %v2098 = vand.u32 %v1509, 4294901760
    %2099 = vmatpush1.msra.mxu0 %v2098
    %2100 = vmatprep.subr.mxu0 0.0
    %v2101 = vand.u32 %v1510, 4294901760
    %2102 = vmatpush1.msra.mxu0 %v2101
    %2103 = vmatprep.subr.mxu0 0.0
    %v2104 = vand.u32 %v1511, 4294901760
    %2105 = vmatpush1.msra.mxu0 %v2104
    %2106 = vmatprep.subr.mxu0 0.0
    %v2107 = vand.u32 %v1512, 4294901760
    %2108 = vmatpush1.msra.mxu0 %v2107
    %2109 = vmatprep.subr.mxu0 0.0
    %v2110 = vand.u32 %v1513, 4294901760
    %2111 = vmatpush1.msra.mxu0 %v2110
    %2112 = vmatprep.subr.mxu0 0.0
    %v2113 = vand.u32 %v1514, 4294901760
    %2114 = vmatpush1.msra.mxu0 %v2113
    %2115 = vmatprep.subr.mxu0 0.0
    %v2116 = vand.u32 %v1515, 4294901760
    %2117 = vmatpush1.msra.mxu0 %v2116
    %2118 = vmatprep.subr.mxu0 0.0
    %v2119 = vand.u32 %v1516, 4294901760
    %2120 = vmatpush1.msra.mxu0 %v2119
    %2121 = vmatprep.subr.mxu0 0.0
    %v2122 = vand.u32 %v1517, 4294901760
    %2123 = vmatpush1.msra.mxu0 %v2122
    %2124 = vmatprep.subr.mxu0 0.0
    %v2125 = vand.u32 %v1518, 4294901760
    %2126 = vmatpush1.msra.mxu0 %v2125
    %2127 = vmatprep.subr.mxu0 0.0
    %2128 = vmatpush1.msra.mxu0 0.0
    %2129 = vmatprep.subr.mxu0 0.0
    %2130 = vmatpush1.msra.mxu0 0.0
    %2131 = vmatprep.subr.mxu0 0.0
    %2132 = vmatpush1.msra.mxu0 0.0
    %2133 = vmatprep.subr.mxu0 0.0
    %2134 = vmatpush1.msra.mxu0 0.0
    %2135 = vmatprep.subr.mxu0 0.0
    %2136 = vmatpush1.msra.mxu0 0.0
    %2137 = vmatprep.subr.mxu0 0.0
    %2138 = vmatpush1.msra.mxu0 0.0
    %2139 = vmatprep.subr.mxu0 0.0
    %2140 = vmatpush1.msra.mxu0 0.0
    %2141 = vmatprep.subr.mxu0 0.0
    %2142 = vmatpush1.msra.mxu0 0.0
    %2143 = vmatprep.subr.mxu0 0.0
    %2144 = vmatpush1.msra.mxu0 0.0
    %2145 = vmatprep.subr.mxu0 0.0
    %2146 = vmatpush1.msra.mxu0 0.0
    %2147 = vmatprep.subr.mxu0 0.0
    %2148 = vmatpush1.msra.mxu0 0.0
    %2149 = vmatprep.subr.mxu0 0.0
    %2150 = vmatpush1.msra.mxu0 0.0
    %2151 = vmatprep.subr.mxu0 0.0
    %2152 = vmatpush1.msra.mxu0 0.0
    %2153 = vmatprep.subr.mxu0 0.0
    %2154 = vmatpush1.msra.mxu0 0.0
    %2155 = vmatprep.subr.mxu0 0.0
    %2156 = vmatpush1.msra.mxu0 0.0
    %2157 = vmatprep.subr.mxu0 0.0
    %2158 = vmatpush1.msra.mxu0 0.0
    %2159 = vmatprep.mubr.f32.mxu0 0.0
    %v2160 = vand.u32 %v38, 4294901760
    %2161 = vmatmul.mubr.f32.gmra.mrb[0].mxu0 %v2160
    %v2162 = vpop.f32.mrb[0].mxu0
    %v2163 = vadd.f32 %v2076, %v2162
    %v2164 = vpop.f32.mrb[0].mxu0
    %2165 = vdwg.mxu0
    %2166 = vst [vmem:[#allocation2] sm:$0xf] %v2163
    // Predicated region
    $region22: #{tpu_custom_call.1} parent=1 // pred_check
      _
    $region23: #{tpu_custom_call.1} parent=1 // pred_check_branch
      %2168 = sbr.rel (0) target = $region25
    $region24: #{tpu_custom_call.1} parent=1 // pred_region
      %s2170 = ssub.s32 64, 64
      %2171 = vsyncadd [#allocation3], %s2170
      %s2173 = sshll.u32 [#allocation2], 4
      %s2174 = int_to_ptr.vmem [resolvable:$true] %s2173
      %2176 = dma.vmem_to_hbm [thread:$0]  %s2174, 64, %s5, [#allocation3]
    $region25: #{tpu_custom_call.1} parent=1 // pred_fallthru
      _
    // Predicated region
    $region26: #{tpu_custom_call.1} parent=1 // pred_check
      _
    $region27: #{tpu_custom_call.1} parent=1 // pred_check_branch
      %2178 = sbr.rel (0) target = $region29
    $region28: #{tpu_custom_call.1} parent=1 // pred_region
      %2179 = dma.done [#allocation3], 64
    $region29: #{tpu_custom_call.1} parent=1 // pred_fallthru
      _
    %2180 = vsyncpa [#allocation3], 1

</llo_original>
